<compile_context>
chip_gen: v5e
topology: v5e:2x2
jax: 0.10.0
libtpu: 0.0.40
codegen_flags: <defaults>
</compile_context>

<pallas_src>
import functools

import jax
import jax.numpy as jnp
from jax.experimental import pallas as pl
from jax.experimental.pallas import tpu as pltpu


def fm_kernel(lhs_ref, colnorm_ref, feat_ref, fv_ref, gbias_ref, out_ref, *, ch):
    # lhs_ref:     (K+1, V) f32  rows 0..K-1 = emb^T, row K = per-feature bias (VMEM resident)
    # colnorm_ref: (1,   V) f32  colnorm[v] = sum_k emb[v,k]^2 (VMEM resident)
    # feat_ref:    (F,  TB) i32  feature ids   (batch rows on the lane axis, streamed)
    # fv_ref:      (F,  TB) f32  feature values (batch rows on the lane axis, streamed)
    # gbias_ref:   (1,)     f32  global bias, SMEM
    # out_ref:     (1,  TB) f32  lane-dense output slab for this tile
    K1, V = lhs_ref.shape
    K = K1 - 1
    F, TB = feat_ref.shape
    n_chunks = TB // ch
    gbias = gbias_ref[0]

    @pl.loop(0, n_chunks)
    def _(c):
        col = pl.multiple_of(c * ch, ch)
        feats = feat_ref[:, pl.ds(col, ch)]                      # (F, CH) int32
        fv = fv_ref[:, pl.ds(col, ch)].astype(jnp.float32)       # (F, CH)
        fv2 = fv * fv                                            # (F, CH)

        # Per-chunk one-hot "scatter" matrices with batch on lanes:
        #   w1[v, b] = sum_f fv[f, b]    * [feats[f, b] == v]
        #   w2[v, b] = sum_f fv[f, b]**2 * [feats[f, b] == v]
        vocab = jax.lax.broadcasted_iota(jnp.int32, (V, ch), 0)
        w1 = jnp.zeros((V, ch), jnp.float32)
        w2 = jnp.zeros((V, ch), jnp.float32)
        for f in range(F):                                       # F small & static -> unrolled
            eq = feats[f:f + 1, :] == vocab                      # (V, CH) bool
            w1 = w1 + jnp.where(eq, fv[f:f + 1, :], 0.0)
            w2 = w2 + jnp.where(eq, fv2[f:f + 1, :], 0.0)

        # MXU: gather + weight + reduce-over-features fused into matmuls.
        # s rows 0..K-1 = sum_f fv*emb (per factor); row K = per-feature bias term.
        s = jnp.dot(lhs_ref[...], w1, preferred_element_type=jnp.float32)       # (K+1, CH)
        sq = jnp.dot(colnorm_ref[...], w2, preferred_element_type=jnp.float32)  # (1, CH)

        emb_rows = s[0:K, :]                                     # (K, CH)
        fbias = s[K:K + 1, :]                                    # (1, CH)
        fm = 0.5 * (jnp.sum(emb_rows * emb_rows, axis=0, keepdims=True) - sq)    # (1, CH)

        # FM_layers: Dropout is identity at inference; batch_norm=False here.
        # TODO(synk): BatchNorm1d (batch_norm=True, training-mode batch stats) not implemented.
        out_ref[:, pl.ds(col, ch)] = fm + fbias + gbias


def fm_forward(features, feature_values, emb_table, bias_table, global_bias,
               *, tb=1024, lane_chunk=256):
    B, F = features.shape
    V, K = emb_table.shape
    assert lane_chunk % 128 == 0, "lane chunk must be a multiple of 128"
    assert tb % lane_chunk == 0, "tile must be a whole number of lane chunks"

    n_tiles = (B + tb - 1) // tb
    Bp = n_tiles * tb
    if Bp != B:
        pad = Bp - B
        features = jnp.pad(features, ((0, pad), (0, 0)))              # padded rows: id 0
        feature_values = jnp.pad(feature_values, ((0, pad), (0, 0)))  # padded rows: fv 0

    # Layout plumbing: batch on the lane (last) axis for the streamed arrays.
    # TODO(synk): ideally the caller provides (F, B)-major inputs so this extra
    # HBM transpose pass disappears; kept to preserve the (B, F) module API.
    feat_t = jnp.transpose(features.astype(jnp.int32))                # (F, Bp)
    fv_t = jnp.transpose(feature_values.astype(jnp.float32))          # (F, Bp)

    emb_f32 = emb_table.astype(jnp.float32)
    lhs = jnp.concatenate(
        [jnp.transpose(emb_f32),                                      # (K, V)
         bias_table.astype(jnp.float32).reshape(1, V)],               # (1, V) bias row
        axis=0)                                                       # (K+1, V)
    colnorm = jnp.sum(emb_f32 * emb_f32, axis=1).reshape(1, V)        # (1, V)
    gbias = jnp.asarray(global_bias, jnp.float32).reshape(1)          # (1,)

    kernel = functools.partial(fm_kernel, ch=lane_chunk)
    out = pl.pallas_call(
        kernel,
        out_shape=jax.ShapeDtypeStruct((1, Bp), jnp.float32),
        grid_spec=pltpu.PrefetchScalarGridSpec(
            num_scalar_prefetch=0,
            grid=(n_tiles,),
            in_specs=[
                pl.BlockSpec((K + 1, V), lambda i: (0, 0)),   # resident: [emb^T ; bias]
                pl.BlockSpec((1, V), lambda i: (0, 0)),       # resident: column sq-norms
                pl.BlockSpec((F, tb), lambda i: (0, i)),      # streamed: feature ids
                pl.BlockSpec((F, tb), lambda i: (0, i)),      # streamed: feature values
                pl.BlockSpec(memory_space=pltpu.MemorySpace.SMEM),  # global bias scalar
            ],
            out_specs=pl.BlockSpec((1, tb), lambda i: (0, i)),       # lane-dense output slab
        ),
        compiler_params=pltpu.CompilerParams(
            dimension_semantics=("parallel",),
        ),
    )(lhs, colnorm, feat_t, fv_t, gbias)
    return out[0, :B]


def fm_reference(features, feature_values, emb_table, bias_table, global_bias):
    emb_g = jnp.take(emb_table, features, axis=0)                     # (B, F, K)
    fv = feature_values[..., None]                                    # (B, F, 1)
    x = emb_g * fv
    sum_square = jnp.sum(x, axis=1) ** 2
    square_sum = jnp.sum(x ** 2, axis=1)
    fm = jnp.sum(0.5 * (sum_square - square_sum), axis=1, keepdims=True)
    fbias = jnp.sum(jnp.take(bias_table, features, axis=0) * fv, axis=1)
    return (fm + fbias + global_bias).reshape(-1)


if __name__ == "__main__":
    # Module hyperparameters (batch_norm=False, drop_prob unused at inference).
    num_features = 64    # vocabulary size of the feature embedding tables
    num_factors = 32     # hidden factor dimension K
    B, F = 1000, 8       # batch (non-multiple of the tile -> exercises padding), features/row

    key = jax.random.PRNGKey(0)
    k_emb, k_bias, k_feat, k_val = jax.random.split(key, 4)

    # Embeddings ~ N(0, 0.01) as in the PyTorch __init__; biases made non-zero
    # here (instead of the zero init) so the bias terms are actually exercised.
    emb_table = 0.01 * jax.random.normal(k_emb, (num_features, num_factors), jnp.float32)
    bias_table = 0.01 * jax.random.normal(k_bias, (num_features, 1), jnp.float32)
    global_bias = jnp.array([0.1], jnp.float32)

    features = jax.random.randint(k_feat, (B, F), 0, num_features, dtype=jnp.int32)
    feature_values = jax.random.uniform(k_val, (B, F), jnp.float32)

    # tb=512 -> 2 grid tiles (keeps both v7x TensorCores busy), 2 lane chunks/tile.
    out = fm_forward(features, feature_values, emb_table, bias_table, global_bias,
                     tb=512, lane_chunk=256)
    out = jax.block_until_ready(out)

    ref = fm_reference(features, feature_values, emb_table, bias_table, global_bias)
    assert out.shape == (B,)
    assert jnp.allclose(out, ref, atol=1e-5, rtol=1e-5), float(jnp.max(jnp.abs(out - ref)))
    print("KERNEL_OK")
</pallas_src>

<mosaic_0001>
module attributes {stable_mosaic.version = 11 : i64} {
  func.func @fm_kernel(%arg0: i32, %arg1: memref<33x64xf32, #tpu.memory_space<vmem>>, %arg2: memref<1x64xf32, #tpu.memory_space<vmem>>, %arg3: memref<8x512xi32, #tpu.memory_space<vmem>>, %arg4: memref<8x512xf32, #tpu.memory_space<vmem>>, %arg5: memref<1xf32, #tpu.memory_space<smem>>, %arg6: memref<1x512xf32, #tpu.memory_space<vmem>>) attributes {dimension_semantics = [#tpu.dimension_semantics<parallel>], iteration_bounds = array<i64: 2>, scalar_prefetch = 0 : i64, scratch_operands = 0 : i64, tpu.core_type = #tpu.core_type<tc>, window_params = [{pipeline_mode = #tpu.pipeline_mode<synchronous>, transform_indices = @transform_0, window_bounds = array<i64: 33, 64>}, {pipeline_mode = #tpu.pipeline_mode<synchronous>, transform_indices = @transform_1, window_bounds = array<i64: 1, 64>}, {transform_indices = @transform_2, window_bounds = array<i64: 8, 512>}, {transform_indices = @transform_3, window_bounds = array<i64: 8, 512>}, {transform_indices = @transform_4, window_bounds = array<i64: 1>}, {transform_indices = @transform_5, window_bounds = array<i64: 1, 512>}]} {
    %c0 = arith.constant 0 : index
    %0 = memref.load %arg5[%c0] : memref<1xf32, #tpu.memory_space<smem>>
    %c0_i32 = arith.constant 0 : i32
    %c2_i32 = arith.constant 2 : i32
    %1 = arith.addi %c0_i32, %c2_i32 : i32
    %c1_i32 = arith.constant 1 : i32
    scf.for %arg7 = %c0_i32 to %1 step %c1_i32  : i32 {
      %c1_i32_1 = arith.constant 1 : i32
      %2 = arith.muli %arg7, %c1_i32_1 : i32
      %c0_i32_2 = arith.constant 0 : i32
      %3 = arith.addi %c0_i32_2, %2 : i32
      %c256_i32 = arith.constant 256 : i32
      %4 = arith.muli %3, %c256_i32 : i32
      %5 = tpu.assume_multiple %4, 256 : i32
      %c0_3 = arith.constant 0 : index
      %6 = arith.index_cast %5 : i32 to index
      %7 = vector.load %arg3[%c0_3, %6] : memref<8x512xi32, #tpu.memory_space<vmem>>, vector<8x256xi32>
      %c0_4 = arith.constant 0 : index
      %8 = arith.index_cast %5 : i32 to index
      %9 = vector.load %arg4[%c0_4, %8] : memref<8x512xf32, #tpu.memory_space<vmem>>, vector<8x256xf32>
      %10 = arith.mulf %9, %9 : vector<8x256xf32>
      %11 = tpu.iota {dimensions = array<i32: 0>} : vector<64x256xi32>
      %cst = arith.constant 0.000000e+00 : f32
      %12 = vector.broadcast %cst : f32 to vector<64x256xf32>
      %cst_5 = arith.constant 0.000000e+00 : f32
      %13 = vector.broadcast %cst_5 : f32 to vector<64x256xf32>
      %14 = vector.extract_strided_slice %7 {offsets = [0, 0], sizes = [1, 256], strides = [1, 1]} : vector<8x256xi32> to vector<1x256xi32>
      %15 = vector.broadcast %14 : vector<1x256xi32> to vector<64x256xi32>
      %16 = arith.cmpi eq, %15, %11 : vector<64x256xi32>
      %17 = vector.extract_strided_slice %9 {offsets = [0, 0], sizes = [1, 256], strides = [1, 1]} : vector<8x256xf32> to vector<1x256xf32>
      %cst_6 = arith.constant 0.000000e+00 : f32
      %18 = vector.shape_cast %17 : vector<1x256xf32> to vector<1x256xf32>
      %19 = vector.broadcast %18 : vector<1x256xf32> to vector<64x256xf32>
      %20 = vector.broadcast %cst_6 : f32 to vector<64x256xf32>
      %21 = arith.select %16, %19, %20 : vector<64x256xi1>, vector<64x256xf32>
      %22 = arith.addf %12, %21 : vector<64x256xf32>
      %23 = vector.extract_strided_slice %10 {offsets = [0, 0], sizes = [1, 256], strides = [1, 1]} : vector<8x256xf32> to vector<1x256xf32>
      %cst_7 = arith.constant 0.000000e+00 : f32
      %24 = vector.shape_cast %23 : vector<1x256xf32> to vector<1x256xf32>
      %25 = vector.broadcast %24 : vector<1x256xf32> to vector<64x256xf32>
      %26 = vector.broadcast %cst_7 : f32 to vector<64x256xf32>
      %27 = arith.select %16, %25, %26 : vector<64x256xi1>, vector<64x256xf32>
      %28 = arith.addf %13, %27 : vector<64x256xf32>
      %29 = vector.extract_strided_slice %7 {offsets = [1, 0], sizes = [1, 256], strides = [1, 1]} : vector<8x256xi32> to vector<1x256xi32>
      %30 = vector.broadcast %29 : vector<1x256xi32> to vector<64x256xi32>
      %31 = arith.cmpi eq, %30, %11 : vector<64x256xi32>
      %32 = vector.extract_strided_slice %9 {offsets = [1, 0], sizes = [1, 256], strides = [1, 1]} : vector<8x256xf32> to vector<1x256xf32>
      %cst_8 = arith.constant 0.000000e+00 : f32
      %33 = vector.shape_cast %32 : vector<1x256xf32> to vector<1x256xf32>
      %34 = vector.broadcast %33 : vector<1x256xf32> to vector<64x256xf32>
      %35 = vector.broadcast %cst_8 : f32 to vector<64x256xf32>
      %36 = arith.select %31, %34, %35 : vector<64x256xi1>, vector<64x256xf32>
      %37 = arith.addf %22, %36 : vector<64x256xf32>
      %38 = vector.extract_strided_slice %10 {offsets = [1, 0], sizes = [1, 256], strides = [1, 1]} : vector<8x256xf32> to vector<1x256xf32>
      %cst_9 = arith.constant 0.000000e+00 : f32
      %39 = vector.shape_cast %38 : vector<1x256xf32> to vector<1x256xf32>
      %40 = vector.broadcast %39 : vector<1x256xf32> to vector<64x256xf32>
      %41 = vector.broadcast %cst_9 : f32 to vector<64x256xf32>
      %42 = arith.select %31, %40, %41 : vector<64x256xi1>, vector<64x256xf32>
      %43 = arith.addf %28, %42 : vector<64x256xf32>
      %44 = vector.extract_strided_slice %7 {offsets = [2, 0], sizes = [1, 256], strides = [1, 1]} : vector<8x256xi32> to vector<1x256xi32>
      %45 = vector.broadcast %44 : vector<1x256xi32> to vector<64x256xi32>
      %46 = arith.cmpi eq, %45, %11 : vector<64x256xi32>
      %47 = vector.extract_strided_slice %9 {offsets = [2, 0], sizes = [1, 256], strides = [1, 1]} : vector<8x256xf32> to vector<1x256xf32>
      %cst_10 = arith.constant 0.000000e+00 : f32
      %48 = vector.shape_cast %47 : vector<1x256xf32> to vector<1x256xf32>
      %49 = vector.broadcast %48 : vector<1x256xf32> to vector<64x256xf32>
      %50 = vector.broadcast %cst_10 : f32 to vector<64x256xf32>
      %51 = arith.select %46, %49, %50 : vector<64x256xi1>, vector<64x256xf32>
      %52 = arith.addf %37, %51 : vector<64x256xf32>
      %53 = vector.extract_strided_slice %10 {offsets = [2, 0], sizes = [1, 256], strides = [1, 1]} : vector<8x256xf32> to vector<1x256xf32>
      %cst_11 = arith.constant 0.000000e+00 : f32
      %54 = vector.shape_cast %53 : vector<1x256xf32> to vector<1x256xf32>
      %55 = vector.broadcast %54 : vector<1x256xf32> to vector<64x256xf32>
      %56 = vector.broadcast %cst_11 : f32 to vector<64x256xf32>
      %57 = arith.select %46, %55, %56 : vector<64x256xi1>, vector<64x256xf32>
      %58 = arith.addf %43, %57 : vector<64x256xf32>
      %59 = vector.extract_strided_slice %7 {offsets = [3, 0], sizes = [1, 256], strides = [1, 1]} : vector<8x256xi32> to vector<1x256xi32>
      %60 = vector.broadcast %59 : vector<1x256xi32> to vector<64x256xi32>
      %61 = arith.cmpi eq, %60, %11 : vector<64x256xi32>
      %62 = vector.extract_strided_slice %9 {offsets = [3, 0], sizes = [1, 256], strides = [1, 1]} : vector<8x256xf32> to vector<1x256xf32>
      %cst_12 = arith.constant 0.000000e+00 : f32
      %63 = vector.shape_cast %62 : vector<1x256xf32> to vector<1x256xf32>
      %64 = vector.broadcast %63 : vector<1x256xf32> to vector<64x256xf32>
      %65 = vector.broadcast %cst_12 : f32 to vector<64x256xf32>
      %66 = arith.select %61, %64, %65 : vector<64x256xi1>, vector<64x256xf32>
      %67 = arith.addf %52, %66 : vector<64x256xf32>
      %68 = vector.extract_strided_slice %10 {offsets = [3, 0], sizes = [1, 256], strides = [1, 1]} : vector<8x256xf32> to vector<1x256xf32>
      %cst_13 = arith.constant 0.000000e+00 : f32
      %69 = vector.shape_cast %68 : vector<1x256xf32> to vector<1x256xf32>
      %70 = vector.broadcast %69 : vector<1x256xf32> to vector<64x256xf32>
      %71 = vector.broadcast %cst_13 : f32 to vector<64x256xf32>
      %72 = arith.select %61, %70, %71 : vector<64x256xi1>, vector<64x256xf32>
      %73 = arith.addf %58, %72 : vector<64x256xf32>
      %74 = vector.extract_strided_slice %7 {offsets = [4, 0], sizes = [1, 256], strides = [1, 1]} : vector<8x256xi32> to vector<1x256xi32>
      %75 = vector.broadcast %74 : vector<1x256xi32> to vector<64x256xi32>
      %76 = arith.cmpi eq, %75, %11 : vector<64x256xi32>
      %77 = vector.extract_strided_slice %9 {offsets = [4, 0], sizes = [1, 256], strides = [1, 1]} : vector<8x256xf32> to vector<1x256xf32>
      %cst_14 = arith.constant 0.000000e+00 : f32
      %78 = vector.shape_cast %77 : vector<1x256xf32> to vector<1x256xf32>
      %79 = vector.broadcast %78 : vector<1x256xf32> to vector<64x256xf32>
      %80 = vector.broadcast %cst_14 : f32 to vector<64x256xf32>
      %81 = arith.select %76, %79, %80 : vector<64x256xi1>, vector<64x256xf32>
      %82 = arith.addf %67, %81 : vector<64x256xf32>
      %83 = vector.extract_strided_slice %10 {offsets = [4, 0], sizes = [1, 256], strides = [1, 1]} : vector<8x256xf32> to vector<1x256xf32>
      %cst_15 = arith.constant 0.000000e+00 : f32
      %84 = vector.shape_cast %83 : vector<1x256xf32> to vector<1x256xf32>
      %85 = vector.broadcast %84 : vector<1x256xf32> to vector<64x256xf32>
      %86 = vector.broadcast %cst_15 : f32 to vector<64x256xf32>
      %87 = arith.select %76, %85, %86 : vector<64x256xi1>, vector<64x256xf32>
      %88 = arith.addf %73, %87 : vector<64x256xf32>
      %89 = vector.extract_strided_slice %7 {offsets = [5, 0], sizes = [1, 256], strides = [1, 1]} : vector<8x256xi32> to vector<1x256xi32>
      %90 = vector.broadcast %89 : vector<1x256xi32> to vector<64x256xi32>
      %91 = arith.cmpi eq, %90, %11 : vector<64x256xi32>
      %92 = vector.extract_strided_slice %9 {offsets = [5, 0], sizes = [1, 256], strides = [1, 1]} : vector<8x256xf32> to vector<1x256xf32>
      %cst_16 = arith.constant 0.000000e+00 : f32
      %93 = vector.shape_cast %92 : vector<1x256xf32> to vector<1x256xf32>
      %94 = vector.broadcast %93 : vector<1x256xf32> to vector<64x256xf32>
      %95 = vector.broadcast %cst_16 : f32 to vector<64x256xf32>
      %96 = arith.select %91, %94, %95 : vector<64x256xi1>, vector<64x256xf32>
      %97 = arith.addf %82, %96 : vector<64x256xf32>
      %98 = vector.extract_strided_slice %10 {offsets = [5, 0], sizes = [1, 256], strides = [1, 1]} : vector<8x256xf32> to vector<1x256xf32>
      %cst_17 = arith.constant 0.000000e+00 : f32
      %99 = vector.shape_cast %98 : vector<1x256xf32> to vector<1x256xf32>
      %100 = vector.broadcast %99 : vector<1x256xf32> to vector<64x256xf32>
      %101 = vector.broadcast %cst_17 : f32 to vector<64x256xf32>
      %102 = arith.select %91, %100, %101 : vector<64x256xi1>, vector<64x256xf32>
      %103 = arith.addf %88, %102 : vector<64x256xf32>
      %104 = vector.extract_strided_slice %7 {offsets = [6, 0], sizes = [1, 256], strides = [1, 1]} : vector<8x256xi32> to vector<1x256xi32>
      %105 = vector.broadcast %104 : vector<1x256xi32> to vector<64x256xi32>
      %106 = arith.cmpi eq, %105, %11 : vector<64x256xi32>
      %107 = vector.extract_strided_slice %9 {offsets = [6, 0], sizes = [1, 256], strides = [1, 1]} : vector<8x256xf32> to vector<1x256xf32>
      %cst_18 = arith.constant 0.000000e+00 : f32
      %108 = vector.shape_cast %107 : vector<1x256xf32> to vector<1x256xf32>
      %109 = vector.broadcast %108 : vector<1x256xf32> to vector<64x256xf32>
      %110 = vector.broadcast %cst_18 : f32 to vector<64x256xf32>
      %111 = arith.select %106, %109, %110 : vector<64x256xi1>, vector<64x256xf32>
      %112 = arith.addf %97, %111 : vector<64x256xf32>
      %113 = vector.extract_strided_slice %10 {offsets = [6, 0], sizes = [1, 256], strides = [1, 1]} : vector<8x256xf32> to vector<1x256xf32>
      %cst_19 = arith.constant 0.000000e+00 : f32
      %114 = vector.shape_cast %113 : vector<1x256xf32> to vector<1x256xf32>
      %115 = vector.broadcast %114 : vector<1x256xf32> to vector<64x256xf32>
      %116 = vector.broadcast %cst_19 : f32 to vector<64x256xf32>
      %117 = arith.select %106, %115, %116 : vector<64x256xi1>, vector<64x256xf32>
      %118 = arith.addf %103, %117 : vector<64x256xf32>
      %119 = vector.extract_strided_slice %7 {offsets = [7, 0], sizes = [1, 256], strides = [1, 1]} : vector<8x256xi32> to vector<1x256xi32>
      %120 = vector.broadcast %119 : vector<1x256xi32> to vector<64x256xi32>
      %121 = arith.cmpi eq, %120, %11 : vector<64x256xi32>
      %122 = vector.extract_strided_slice %9 {offsets = [7, 0], sizes = [1, 256], strides = [1, 1]} : vector<8x256xf32> to vector<1x256xf32>
      %cst_20 = arith.constant 0.000000e+00 : f32
      %123 = vector.shape_cast %122 : vector<1x256xf32> to vector<1x256xf32>
      %124 = vector.broadcast %123 : vector<1x256xf32> to vector<64x256xf32>
      %125 = vector.broadcast %cst_20 : f32 to vector<64x256xf32>
      %126 = arith.select %121, %124, %125 : vector<64x256xi1>, vector<64x256xf32>
      %127 = arith.addf %112, %126 : vector<64x256xf32>
      %128 = vector.extract_strided_slice %10 {offsets = [7, 0], sizes = [1, 256], strides = [1, 1]} : vector<8x256xf32> to vector<1x256xf32>
      %cst_21 = arith.constant 0.000000e+00 : f32
      %129 = vector.shape_cast %128 : vector<1x256xf32> to vector<1x256xf32>
      %130 = vector.broadcast %129 : vector<1x256xf32> to vector<64x256xf32>
      %131 = vector.broadcast %cst_21 : f32 to vector<64x256xf32>
      %132 = arith.select %121, %130, %131 : vector<64x256xi1>, vector<64x256xf32>
      %133 = arith.addf %118, %132 : vector<64x256xf32>
      %c0_22 = arith.constant 0 : index
      %c0_23 = arith.constant 0 : index
      %134 = vector.load %arg1[%c0_22, %c0_23] : memref<33x64xf32, #tpu.memory_space<vmem>>, vector<33x64xf32>
      %cst_24 = arith.constant dense<0.000000e+00> : vector<33x256xf32>
      %135 = tpu.matmul %134, %127, %cst_24 {dimension_numbers = #tpu.dot_dimension_numbers<[1], [0], [0], [1], [0, 0, 1, 1], [], []>} : vector<33x64xf32>, vector<64x256xf32>, vector<33x256xf32> -> vector<33x256xf32>
      %c0_25 = arith.constant 0 : index
      %c0_26 = arith.constant 0 : index
      %136 = vector.load %arg2[%c0_25, %c0_26] : memref<1x64xf32, #tpu.memory_space<vmem>>, vector<1x64xf32>
      %cst_27 = arith.constant dense<0.000000e+00> : vector<1x256xf32>
      %137 = tpu.matmul %136, %133, %cst_27 {dimension_numbers = #tpu.dot_dimension_numbers<[1], [0], [0], [1], [0, 0, 1, 1], [], []>} : vector<1x64xf32>, vector<64x256xf32>, vector<1x256xf32> -> vector<1x256xf32>
      %138 = vector.extract_strided_slice %135 {offsets = [0, 0], sizes = [32, 256], strides = [1, 1]} : vector<33x256xf32> to vector<32x256xf32>
      %139 = vector.extract_strided_slice %135 {offsets = [32, 0], sizes = [1, 256], strides = [1, 1]} : vector<33x256xf32> to vector<1x256xf32>
      %140 = arith.mulf %138, %138 : vector<32x256xf32>
      %cst_28 = arith.constant dense<0.000000e+00> : vector<256xf32>
      %141 = vector.multi_reduction <add>, %140, %cst_28 [0] : vector<32x256xf32> to vector<256xf32>
      %142 = vector.shape_cast %141 : vector<256xf32> to vector<1x256xf32>
      %143 = arith.subf %142, %137 : vector<1x256xf32>
      %cst_29 = arith.constant 5.000000e-01 : f32
      %144 = vector.broadcast %cst_29 : f32 to vector<1x256xf32>
      %145 = arith.mulf %144, %143 : vector<1x256xf32>
      %146 = arith.addf %145, %139 : vector<1x256xf32>
      %147 = vector.broadcast %0 : f32 to vector<1x256xf32>
      %148 = arith.addf %146, %147 : vector<1x256xf32>
      %c0_30 = arith.constant 0 : index
      %149 = arith.index_cast %5 : i32 to index
      %150 = vector.load %arg6[%c0_30, %149] : memref<1x512xf32, #tpu.memory_space<vmem>>, vector<1x256xf32>
      tpu.vector_store %arg6[%c0_30, %149], %148 {strides = array<i32>} : memref<1x512xf32, #tpu.memory_space<vmem>>, vector<1x256xf32>,
    }
    %c2_i32_0 = arith.constant 2 : i32
    return
  }
  func.func @transform_0(%arg0: i32) -> (i32, i32) {
    %c0_i32 = arith.constant 0 : i32
    %c0_i32_0 = arith.constant 0 : i32
    %c0_i32_1 = arith.constant 0 : i32
    return %c0_i32, %c0_i32_0 : i32, i32
  }
  func.func @transform_1(%arg0: i32) -> (i32, i32) {
    %c0_i32 = arith.constant 0 : i32
    %c0_i32_0 = arith.constant 0 : i32
    %c0_i32_1 = arith.constant 0 : i32
    return %c0_i32, %c0_i32_0 : i32, i32
  }
  func.func @transform_2(%arg0: i32) -> (i32, i32) {
    %c0_i32 = arith.constant 0 : i32
    %c0_i32_0 = arith.constant 0 : i32
    return %c0_i32, %arg0 : i32, i32
  }
  func.func @transform_3(%arg0: i32) -> (i32, i32) {
    %c0_i32 = arith.constant 0 : i32
    %c0_i32_0 = arith.constant 0 : i32
    return %c0_i32, %arg0 : i32, i32
  }
  func.func @transform_4(%arg0: i32) -> i32 {
    %c0_i32 = arith.constant 0 : i32
    %c0_i32_0 = arith.constant 0 : i32
    return %c0_i32 : i32
  }
  func.func @transform_5(%arg0: i32) -> (i32, i32) {
    %c0_i32 = arith.constant 0 : i32
    %c0_i32_0 = arith.constant 0 : i32
    return %c0_i32, %arg0 : i32, i32
  }
}

</mosaic_0001>

<llo_original>
// kernel: tpu_custom_call.1
$region0: #{tpu_custom_call.1}
  #allocation0 [shape = 'u32[]', space=smem, size = 0x4, offset = 0x4, fixed_abs, tag = 'smem constant byte address 0x4 - core index']
  #allocation1 [shape = 'u32[72,128]{1,0:T(1,128)}', space=vmem, size = 0x9000, scoped, tag = 'internal scratch']
  #allocation2 [shape = 'f32[1]{0:T(128)S(6)}', space=smem, size = 0x200, scoped, tag = 'scoped memory for tpu_custom_call.1']
  %s0 = inlined_call_operand.hbm [shape: f32[33,64], index: 0, kind: input, shape index: {}]
  %s1 = inlined_call_operand.vmem [shape: f32[1,64], index: 1, kind: input, shape index: {}]
  %s2 = inlined_call_operand.hbm [shape: s32[8,1024], index: 2, kind: input, shape index: {}]
  %s3 = inlined_call_operand.hbm [shape: f32[8,1024], index: 3, kind: input, shape index: {}]
  %s4 = inlined_call_operand.<no memory space> [shape: f32[1], index: 4, kind: input, shape index: {}]
  %s5 = inlined_call_operand.hbm [shape: f32[1,1024], index: 5, kind: output, shape index: {}]
  %s6 = sld [smem:[#allocation0]]
  $region72: #{tpu_custom_call.1} parent=0
    _
  %s8 = ssub.s32 1, %s6
  %s9 = scalar_select 0, %s8, %s6
  %10 = sst [smem:[#allocation2]] %s4
  $region1: #{tpu_custom_call.1} parent=0
    #allocation3 [shape = 'u8[20480]{0}', space=vmem, size = 0x5000, scoped, tag = 'input window, operand 0, single buffered']
    #allocation4 [shape = 's32[2]{0}', space=sflag, size = 0x8, scoped, tag = 'scoped memory for tpu_custom_call.1']
    #allocation5 [shape = 's32[2]{0}', space=sflag, size = 0x8, scoped, tag = 'scoped memory for tpu_custom_call.1']
    #allocation6 [shape = 'u8[32768]{0}', space=vmem, size = 0x8000, scoped, tag = 'input window, operand 2']
    #allocation7 [shape = 's32[2]{0}', space=sflag, size = 0x8, scoped, tag = 'scoped memory for tpu_custom_call.1']
    #allocation8 [shape = 'u8[32768]{0}', space=vmem, size = 0x8000, scoped, tag = 'input window, operand 3']
    #allocation9 [shape = 'u8[4096]{0}', space=vmem, size = 0x1000, scoped, tag = 'output window, operand 0']
    %11 = vsyncpa [#allocation4], 0
    %12 = vsyncpa [#allocation7], 0
    %s13 = scalar_lea.sflag [#allocation7], 1
    %14 = vsyncpa %s13, 0
    %15 = vsyncpa [#allocation5], 0
    %s16 = scalar_lea.sflag [#allocation5], 1
    %17 = vsyncpa %s16, 0
    loop: start=0, step=1, limit=4
    $region2: #{tpu_custom_call.1} parent=1 // loop_pre_header
      _
    $region3: #{tpu_custom_call.1} parent=1 // loop_header
      %s19 = sphi 0, %s23
      %p20 = scmp.ge.s32.totalorder %s19, 4
      %s27 = sphi 0, %s27
      %s29 = sphi 0, %s27
      %s30 = sphi 0, %s29
      %s44 = sphi 0, %s30
      %s48 = sphi 0, %s48
      %s50 = sphi 0, %s48
      %s51 = sphi 0, %s50
      %s65 = sphi 0, %s51
      %s71 = sphi 0, %s73
      %s74 = sphi 0, %s71
      %s75 = sphi 0, %s74
      %s91 = sphi 0, %s75
      %s97 = sphi 0, %s99
      %s100 = sphi 0, %s97
      %s101 = sphi 0, %s100
      %s117 = sphi 0, %s101
      %s121 = sphi 0, %s121
      %s123 = sphi 0, %s121
      %s124 = sphi 0, %s123
      %s138 = sphi 0, %s124
      %s144 = sphi 0, %s146
      %s147 = sphi 0, %s144
      %s148 = sphi 0, %s147
      %s164 = sphi 0, %s148
    $region4: #{tpu_custom_call.1} parent=1 // loop_header_branch
      %22 = sbr.rel (%p20) target = $region8
    $region5: #{tpu_custom_call.1} parent=1 // loop_body
      %s24 = ssub.s32 %s19, 1
      %s25 = ssub.s32 %s19, 2
      %s26 = sadd.s32 %s19, 1
      %s28 = sadd.s32 %s27, 1
      %p31 = scmp.eq.s32.totalorder %s19, 1
      %p32 = scmp.ne.s32.totalorder %s27, %s29
      %p33 = scmp.eq.s32.totalorder %s19, 0
      %p34 = por %p32, %p33
      %p35 = scmp.ne.s32.totalorder %s27, %s29
      %p36 = scmp.eq.s32.totalorder %s24, 1
      %p37 = por %p35, %p36
      %p38 = scmp.ne.s32.totalorder %s29, %s30
      %p39 = scmp.eq.s32.totalorder %s24, 0
      %p40 = por %p38, %p39
      %p41 = scmp.ne.s32.totalorder %s29, %s30
      %p42 = scmp.eq.s32.totalorder %s25, 1
      %p43 = por %p41, %p42
      %p45 = scmp.ne.s32.totalorder %s30, %s44
      %p46 = scmp.eq.s32.totalorder %s25, 0
      %p47 = por %p45, %p46
      %s49 = sadd.s32 %s48, 1
      %p52 = scmp.eq.s32.totalorder %s19, 1
      %p53 = scmp.ne.s32.totalorder %s48, %s50
      %p54 = scmp.eq.s32.totalorder %s19, 0
      %p55 = por %p53, %p54
      %p56 = scmp.ne.s32.totalorder %s48, %s50
      %p57 = scmp.eq.s32.totalorder %s24, 1
      %p58 = por %p56, %p57
      %p59 = scmp.ne.s32.totalorder %s50, %s51
      %p60 = scmp.eq.s32.totalorder %s24, 0
      %p61 = por %p59, %p60
      %p62 = scmp.ne.s32.totalorder %s50, %s51
      %p63 = scmp.eq.s32.totalorder %s25, 1
      %p64 = por %p62, %p63
      %p66 = scmp.ne.s32.totalorder %s51, %s65
      %p67 = scmp.eq.s32.totalorder %s25, 0
      %p68 = por %p66, %p67
      %s69 = ssub.s32 %s19, %s26
      %p70 = scmp.eq.s32.totalorder %s69, 0
      %s72 = sadd.s32 %s71, 1
      %s73 = scalar_select %p70, %s71, %s72
      %p76 = pneg %p70
      %p77 = scmp.eq.s32.totalorder %s19, 1
      %p78 = por %p76, %p77
      %p79 = scmp.ne.s32.totalorder %s71, %s74
      %p80 = scmp.eq.s32.totalorder %s19, 0
      %p81 = por %p79, %p80
      %p82 = scmp.ne.s32.totalorder %s71, %s74
      %p83 = scmp.eq.s32.totalorder %s24, 1
      %p84 = por %p82, %p83
      %p85 = scmp.ne.s32.totalorder %s74, %s75
      %p86 = scmp.eq.s32.totalorder %s24, 0
      %p87 = por %p85, %p86
      %p88 = scmp.ne.s32.totalorder %s74, %s75
      %p89 = scmp.eq.s32.totalorder %s25, 1
      %p90 = por %p88, %p89
      %p92 = scmp.ne.s32.totalorder %s75, %s91
      %p93 = scmp.eq.s32.totalorder %s25, 0
      %p94 = por %p92, %p93
      %s95 = ssub.s32 %s19, %s26
      %p96 = scmp.eq.s32.totalorder %s95, 0
      %s98 = sadd.s32 %s97, 1
      %s99 = scalar_select %p96, %s97, %s98
      %p102 = pneg %p96
      %p103 = scmp.eq.s32.totalorder %s19, 1
      %p104 = por %p102, %p103
      %p105 = scmp.ne.s32.totalorder %s97, %s100
      %p106 = scmp.eq.s32.totalorder %s19, 0
      %p107 = por %p105, %p106
      %p108 = scmp.ne.s32.totalorder %s97, %s100
      %p109 = scmp.eq.s32.totalorder %s24, 1
      %p110 = por %p108, %p109
      %p111 = scmp.ne.s32.totalorder %s100, %s101
      %p112 = scmp.eq.s32.totalorder %s24, 0
      %p113 = por %p111, %p112
      %p114 = scmp.ne.s32.totalorder %s100, %s101
      %p115 = scmp.eq.s32.totalorder %s25, 1
      %p116 = por %p114, %p115
      %p118 = scmp.ne.s32.totalorder %s101, %s117
      %p119 = scmp.eq.s32.totalorder %s25, 0
      %p120 = por %p118, %p119
      %s122 = sadd.s32 %s121, 1
      %p125 = scmp.eq.s32.totalorder %s19, 1
      %p126 = scmp.ne.s32.totalorder %s121, %s123
      %p127 = scmp.eq.s32.totalorder %s19, 0
      %p128 = por %p126, %p127
      %p129 = scmp.ne.s32.totalorder %s121, %s123
      %p130 = scmp.eq.s32.totalorder %s24, 1
      %p131 = por %p129, %p130
      %p132 = scmp.ne.s32.totalorder %s123, %s124
      %p133 = scmp.eq.s32.totalorder %s24, 0
      %p134 = por %p132, %p133
      %p135 = scmp.ne.s32.totalorder %s123, %s124
      %p136 = scmp.eq.s32.totalorder %s25, 1
      %p137 = por %p135, %p136
      %p139 = scmp.ne.s32.totalorder %s124, %s138
      %p140 = scmp.eq.s32.totalorder %s25, 0
      %p141 = por %p139, %p140
      %s142 = ssub.s32 %s19, %s26
      %p143 = scmp.eq.s32.totalorder %s142, 0
      %s145 = sadd.s32 %s144, 1
      %s146 = scalar_select %p143, %s144, %s145
      %p149 = pneg %p143
      %p150 = scmp.eq.s32.totalorder %s19, 1
      %p151 = por %p149, %p150
      %p152 = scmp.ne.s32.totalorder %s144, %s147
      %p153 = scmp.eq.s32.totalorder %s19, 0
      %p154 = por %p152, %p153
      %p155 = scmp.ne.s32.totalorder %s144, %s147
      %p156 = scmp.eq.s32.totalorder %s24, 1
      %p157 = por %p155, %p156
      %p158 = scmp.ne.s32.totalorder %s147, %s148
      %p159 = scmp.eq.s32.totalorder %s24, 0
      %p160 = por %p158, %p159
      %p161 = scmp.ne.s32.totalorder %s147, %s148
      %p162 = scmp.eq.s32.totalorder %s25, 1
      %p163 = por %p161, %p162
      %p165 = scmp.ne.s32.totalorder %s148, %s164
      %p166 = scmp.eq.s32.totalorder %s25, 0
      %p167 = por %p165, %p166
      %p168 = scmp.le.s32.totalorder 1, %s19
      %p169 = scmp.lt.s32.totalorder %s19, 3
      %p170 = pnand %p168, %p169
      %p171 = pneg %p170
      // Predicated region
      $region9: #{tpu_custom_call.1} parent=5 // pred_check
        _
      $region10: #{tpu_custom_call.1} parent=5 // pred_check_branch
        %173 = sbr.rel (%p170) target = $region12
      $region11: #{tpu_custom_call.1} parent=5 // pred_region
        %s174 = ssub.s32 %s19, 1
        // Predicated region
        $region13: #{tpu_custom_call.1} parent=11 // pred_check
          %p175 = pneg %p40
        $region14: #{tpu_custom_call.1} parent=11 // pred_check_branch
          %177 = sbr.rel (%p175) target = $region16
        $region15: #{tpu_custom_call.1} parent=11 // pred_region
          %179 = vsyncadd [#allocation4], 0
          %s180 = sshll.u32 %s0, 4
          %s181 = int_to_ptr.hbm [resolvable:$true] %s180
          %s182 = sshll.u32 [#allocation3], 4
          %s183 = int_to_ptr.vmem [resolvable:$true] %s182
          %188 = dma.hbm_to_vmem [thread:$0]  %s181, 640, %s183, [#allocation4], 128, 128, 8
        $region16: #{tpu_custom_call.1} parent=11 // pred_fallthru
          _
        // Predicated region
        $region17: #{tpu_custom_call.1} parent=11 // pred_check
          %p189 = pneg %p61
        $region18: #{tpu_custom_call.1} parent=11 // pred_check_branch
          %191 = sbr.rel (%p189) target = $region20
        $region19: #{tpu_custom_call.1} parent=11 // pred_region
          _
        $region20: #{tpu_custom_call.1} parent=11 // pred_fallthru
          _
        // Predicated region
        $region21: #{tpu_custom_call.1} parent=11 // pred_check
          %p192 = pneg %p134
        $region22: #{tpu_custom_call.1} parent=11 // pred_check_branch
          %194 = sbr.rel (%p192) target = $region24
        $region23: #{tpu_custom_call.1} parent=11 // pred_region
          _
        $region24: #{tpu_custom_call.1} parent=11 // pred_fallthru
          _
      $region12: #{tpu_custom_call.1} parent=5 // pred_fallthru
        _
      %p195 = scmp.lt.s32.totalorder %s19, 2
      // Predicated region
      $region25: #{tpu_custom_call.1} parent=5 // pred_check
        %p196 = pneg %p195
      $region26: #{tpu_custom_call.1} parent=5 // pred_check_branch
        %198 = sbr.rel (%p196) target = $region28
      $region27: #{tpu_custom_call.1} parent=5 // pred_region
        // Predicated region
        $region29: #{tpu_custom_call.1} parent=27 // pred_check
          %p199 = pneg %p81
        $region30: #{tpu_custom_call.1} parent=27 // pred_check_branch
          %201 = sbr.rel (%p199) target = $region32
        $region31: #{tpu_custom_call.1} parent=27 // pred_region
          %s202 = sand.u32 %s19, 1
          %s203 = scalar_lea.sflag [#allocation7], %s202
          %s204 = sand.u32 %s71, 1
          %s205 = smul.addr %s204, 32
          %s206 = scalar_lea.vmem [#allocation6], %s205
          %s207 = smul.u32 4, %s19
          %209 = vsyncadd %s203, 0
          %s210 = smul.addr %s207, 8
          %s211 = scalar_lea.hbm %s2, %s210
          %s213 = sshll.u32 %s211, 4
          %s214 = int_to_ptr.hbm [resolvable:$true] %s213
          %s215 = sshll.u32 %s206, 4
          %s216 = int_to_ptr.vmem [resolvable:$true] %s215
          %218 = dma.hbm_to_vmem [thread:$0]  %s214, 512, %s216, %s203
        $region32: #{tpu_custom_call.1} parent=27 // pred_fallthru
          _
        // Predicated region
        $region33: #{tpu_custom_call.1} parent=27 // pred_check
          %p219 = pneg %p107
        $region34: #{tpu_custom_call.1} parent=27 // pred_check_branch
          %221 = sbr.rel (%p219) target = $region36
        $region35: #{tpu_custom_call.1} parent=27 // pred_region
          %s222 = sand.u32 %s19, 1
          %s223 = scalar_lea.sflag [#allocation7], %s222
          %s224 = sand.u32 %s97, 1
          %s225 = smul.addr %s224, 32
          %s226 = scalar_lea.vmem [#allocation8], %s225
          %s227 = smul.u32 4, %s19
          %229 = vsyncadd %s223, 0
          %s230 = smul.addr %s227, 8
          %s231 = scalar_lea.hbm %s3, %s230
          %s233 = sshll.u32 %s231, 4
          %s234 = int_to_ptr.hbm [resolvable:$true] %s233
          %s235 = sshll.u32 %s226, 4
          %s236 = int_to_ptr.vmem [resolvable:$true] %s235
          %238 = dma.hbm_to_vmem [thread:$0]  %s234, 512, %s236, %s223
        $region36: #{tpu_custom_call.1} parent=27 // pred_fallthru
          _
      $region28: #{tpu_custom_call.1} parent=5 // pred_fallthru
        _
      %p239 = scmp.le.s32.totalorder 1, %s19
      %p240 = scmp.lt.s32.totalorder %s19, 3
      %p241 = pnand %p239, %p240
      %p242 = pneg %p241
      // Predicated region
      $region37: #{tpu_custom_call.1} parent=5 // pred_check
        _
      $region38: #{tpu_custom_call.1} parent=5 // pred_check_branch
        %244 = sbr.rel (%p241) target = $region40
      $region39: #{tpu_custom_call.1} parent=5 // pred_region
        %s245 = ssub.s32 %s19, 1
        // Predicated region
        $region41: #{tpu_custom_call.1} parent=39 // pred_check
          %p246 = pneg %p40
        $region42: #{tpu_custom_call.1} parent=39 // pred_check_branch
          %248 = sbr.rel (%p246) target = $region44
        $region43: #{tpu_custom_call.1} parent=39 // pred_region
          %250 = dma.done [#allocation4], 640
        $region44: #{tpu_custom_call.1} parent=39 // pred_fallthru
          _
        %s251 = sand.u32 %s24, 1
        %s252 = scalar_lea.sflag [#allocation7], %s251
        %s253 = sand.u32 %s74, 1
        %s254 = smul.addr %s253, 32
        %s255 = scalar_lea.vmem [#allocation6], %s254
        // Predicated region
        $region45: #{tpu_custom_call.1} parent=39 // pred_check
          %p256 = pneg %p87
        $region46: #{tpu_custom_call.1} parent=39 // pred_check_branch
          %258 = sbr.rel (%p256) target = $region48
        $region47: #{tpu_custom_call.1} parent=39 // pred_region
          %260 = dma.done %s252, 512
        $region48: #{tpu_custom_call.1} parent=39 // pred_fallthru
          _
        %s261 = sand.u32 %s24, 1
        %s262 = scalar_lea.sflag [#allocation7], %s261
        %s263 = sand.u32 %s100, 1
        %s264 = smul.addr %s263, 32
        %s265 = scalar_lea.vmem [#allocation8], %s264
        // Predicated region
        $region49: #{tpu_custom_call.1} parent=39 // pred_check
          %p266 = pneg %p113
        $region50: #{tpu_custom_call.1} parent=39 // pred_check_branch
          %268 = sbr.rel (%p266) target = $region52
        $region51: #{tpu_custom_call.1} parent=39 // pred_region
          %270 = dma.done %s262, 512
        $region52: #{tpu_custom_call.1} parent=39 // pred_fallthru
          _
        %p271 = pneg %p40
        %p272 = pneg %p37
        %p273 = pneg %p61
        %p274 = pneg %p58
        %s275 = sand.u32 %s24, 1
        %s276 = scalar_lea.sflag [#allocation7], %s275
        %s277 = sand.u32 %s74, 1
        %s278 = smul.addr %s277, 32
        %s279 = scalar_lea.vmem [#allocation6], %s278
        %p280 = pneg %p87
        %p281 = pneg %p84
        %s282 = sand.u32 %s24, 1
        %s283 = scalar_lea.sflag [#allocation7], %s282
        %s284 = sand.u32 %s100, 1
        %s285 = smul.addr %s284, 32
        %s286 = scalar_lea.vmem [#allocation8], %s285
        %p287 = pneg %p113
        %p288 = pneg %p110
        %p289 = pneg %p134
        %p290 = pneg %p131
        %p291 = pneg %p160
        %p292 = pneg %p157
        %s293 = sand.u32 %s147, 1
        %s294 = scalar_lea.sflag [#allocation5], %s293
        %s295 = sand.u32 %s147, 1
        %s296 = smul.addr %s295, 4
        %s297 = scalar_lea.vmem [#allocation9], %s296
        %s298 = smul.u32 4, %s24
        %s299 = smul.u32 4, %s24
        %s300 = smul.u32 4, %s24
        %s301 = sld [smem:[#allocation2]]
        loop: start=0, step=1, limit=2
        $region53: #{tpu_custom_call.1} parent=39 // loop_pre_header
          _
        $region54: #{tpu_custom_call.1} parent=39 // loop_header
          %s303 = sphi 0, %s307
          %p304 = scmp.ge.s32.totalorder %s303, 2
        $region55: #{tpu_custom_call.1} parent=39 // loop_header_branch
          %306 = sbr.rel (%p304) target = $region59
        $region56: #{tpu_custom_call.1} parent=39 // loop_body
          %s308 = smul.u32 %s303, 256
          %s309 = sshra.s32 %s308, 7
          %s310 = sand.u32 %s308, 127
          %s311 = smul.addr %s309, 8
          %s312 = scalar_lea.vmem %s255, %s311 [#allocation6]
          %v313 = vld [vmem:[%s312] sm:$0xff]
          %v314 = vld [vmem:[%s312 + $0x8] sm:$0xff]
          %s315 = smul.addr %s309, 8
          %s316 = scalar_lea.vmem %s265, %s315 [#allocation8]
          %v317 = vld [vmem:[%s316] sm:$0xff]
          %v318 = vld [vmem:[%s316 + $0x8] sm:$0xff]
          %v319 = vmul.f32 %v317, %v317
          %v320 = vmul.f32 %v318, %v318
          %v321 = vlaneseq
          %v322 = vshrl.u32 %v321, 7
          %v323 = vadd.s32 %v322, 8
          %v324 = vadd.s32 %v322, 16
          %v325 = vadd.s32 %v322, 24
          %v326 = vadd.s32 %v322, 32
          %v327 = vadd.s32 %v322, 40
          %v328 = vadd.s32 %v322, 48
          %v329 = vadd.s32 %v322, 56
          %v330 = vperm.slane %v313, 0
          %v331 = vperm.slane %v314, 0
          %vm332 = vcmp.eq.s32.totalorder %v330, %v322
          %vm333 = vcmp.eq.s32.totalorder %v331, %v322
          %vm334 = vcmp.eq.s32.totalorder %v330, %v323
          %vm335 = vcmp.eq.s32.totalorder %v331, %v323
          %vm336 = vcmp.eq.s32.totalorder %v330, %v324
          %vm337 = vcmp.eq.s32.totalorder %v331, %v324
          %vm338 = vcmp.eq.s32.totalorder %v330, %v325
          %vm339 = vcmp.eq.s32.totalorder %v331, %v325
          %vm340 = vcmp.eq.s32.totalorder %v330, %v326
          %vm341 = vcmp.eq.s32.totalorder %v331, %v326
          %vm342 = vcmp.eq.s32.totalorder %v330, %v327
          %vm343 = vcmp.eq.s32.totalorder %v331, %v327
          %vm344 = vcmp.eq.s32.totalorder %v330, %v328
          %vm345 = vcmp.eq.s32.totalorder %v331, %v328
          %vm346 = vcmp.eq.s32.totalorder %v330, %v329
          %vm347 = vcmp.eq.s32.totalorder %v331, %v329
          %v348 = vperm.slane %v317, 0
          %v349 = vperm.slane %v318, 0
          %v350 = vsel %vm332, %v348, 0.0
          %v351 = vsel %vm333, %v349, 0.0
          %v352 = vsel %vm334, %v348, 0.0
          %v353 = vsel %vm335, %v349, 0.0
          %v354 = vsel %vm336, %v348, 0.0
          %v355 = vsel %vm337, %v349, 0.0
          %v356 = vsel %vm338, %v348, 0.0
          %v357 = vsel %vm339, %v349, 0.0
          %v358 = vsel %vm340, %v348, 0.0
          %v359 = vsel %vm341, %v349, 0.0
          %v360 = vsel %vm342, %v348, 0.0
          %v361 = vsel %vm343, %v349, 0.0
          %v362 = vsel %vm344, %v348, 0.0
          %v363 = vsel %vm345, %v349, 0.0
          %v364 = vsel %vm346, %v348, 0.0
          %v365 = vsel %vm347, %v349, 0.0
          %v366 = vadd.f32 %v350, 0.0
          %v367 = vadd.f32 %v351, 0.0
          %v368 = vadd.f32 %v352, 0.0
          %v369 = vadd.f32 %v353, 0.0
          %v370 = vadd.f32 %v354, 0.0
          %v371 = vadd.f32 %v355, 0.0
          %v372 = vadd.f32 %v356, 0.0
          %v373 = vadd.f32 %v357, 0.0
          %v374 = vadd.f32 %v358, 0.0
          %v375 = vadd.f32 %v359, 0.0
          %v376 = vadd.f32 %v360, 0.0
          %v377 = vadd.f32 %v361, 0.0
          %v378 = vadd.f32 %v362, 0.0
          %v379 = vadd.f32 %v363, 0.0
          %v380 = vadd.f32 %v364, 0.0
          %v381 = vadd.f32 %v365, 0.0
          %v382 = vperm.slane %v319, 0
          %v383 = vperm.slane %v320, 0
          %v384 = vsel %vm332, %v382, 0.0
          %v385 = vsel %vm333, %v383, 0.0
          %v386 = vsel %vm334, %v382, 0.0
          %v387 = vsel %vm335, %v383, 0.0
          %v388 = vsel %vm336, %v382, 0.0
          %v389 = vsel %vm337, %v383, 0.0
          %v390 = vsel %vm338, %v382, 0.0
          %v391 = vsel %vm339, %v383, 0.0
          %v392 = vsel %vm340, %v382, 0.0
          %v393 = vsel %vm341, %v383, 0.0
          %v394 = vsel %vm342, %v382, 0.0
          %v395 = vsel %vm343, %v383, 0.0
          %v396 = vsel %vm344, %v382, 0.0
          %v397 = vsel %vm345, %v383, 0.0
          %v398 = vsel %vm346, %v382, 0.0
          %v399 = vsel %vm347, %v383, 0.0
          %v400 = vadd.f32 %v384, 0.0
          %v401 = vadd.f32 %v385, 0.0
          %v402 = vadd.f32 %v386, 0.0
          %v403 = vadd.f32 %v387, 0.0
          %v404 = vadd.f32 %v388, 0.0
          %v405 = vadd.f32 %v389, 0.0
          %v406 = vadd.f32 %v390, 0.0
          %v407 = vadd.f32 %v391, 0.0
          %v408 = vadd.f32 %v392, 0.0
          %v409 = vadd.f32 %v393, 0.0
          %v410 = vadd.f32 %v394, 0.0
          %v411 = vadd.f32 %v395, 0.0
          %v412 = vadd.f32 %v396, 0.0
          %v413 = vadd.f32 %v397, 0.0
          %v414 = vadd.f32 %v398, 0.0
          %v415 = vadd.f32 %v399, 0.0
          %v416 = vperm.slane %v313, 1
          %v417 = vperm.slane %v314, 1
          %vm418 = vcmp.eq.s32.totalorder %v416, %v322
          %vm419 = vcmp.eq.s32.totalorder %v417, %v322
          %vm420 = vcmp.eq.s32.totalorder %v416, %v323
          %vm421 = vcmp.eq.s32.totalorder %v417, %v323
          %vm422 = vcmp.eq.s32.totalorder %v416, %v324
          %vm423 = vcmp.eq.s32.totalorder %v417, %v324
          %vm424 = vcmp.eq.s32.totalorder %v416, %v325
          %vm425 = vcmp.eq.s32.totalorder %v417, %v325
          %vm426 = vcmp.eq.s32.totalorder %v416, %v326
          %vm427 = vcmp.eq.s32.totalorder %v417, %v326
          %vm428 = vcmp.eq.s32.totalorder %v416, %v327
          %vm429 = vcmp.eq.s32.totalorder %v417, %v327
          %vm430 = vcmp.eq.s32.totalorder %v416, %v328
          %vm431 = vcmp.eq.s32.totalorder %v417, %v328
          %vm432 = vcmp.eq.s32.totalorder %v416, %v329
          %vm433 = vcmp.eq.s32.totalorder %v417, %v329
          %v434 = vperm.slane %v317, 1
          %v435 = vperm.slane %v318, 1
          %v436 = vsel %vm418, %v434, 0.0
          %v437 = vsel %vm419, %v435, 0.0
          %v438 = vsel %vm420, %v434, 0.0
          %v439 = vsel %vm421, %v435, 0.0
          %v440 = vsel %vm422, %v434, 0.0
          %v441 = vsel %vm423, %v435, 0.0
          %v442 = vsel %vm424, %v434, 0.0
          %v443 = vsel %vm425, %v435, 0.0
          %v444 = vsel %vm426, %v434, 0.0
          %v445 = vsel %vm427, %v435, 0.0
          %v446 = vsel %vm428, %v434, 0.0
          %v447 = vsel %vm429, %v435, 0.0
          %v448 = vsel %vm430, %v434, 0.0
          %v449 = vsel %vm431, %v435, 0.0
          %v450 = vsel %vm432, %v434, 0.0
          %v451 = vsel %vm433, %v435, 0.0
          %v452 = vadd.f32 %v366, %v436
          %v453 = vadd.f32 %v367, %v437
          %v454 = vadd.f32 %v368, %v438
          %v455 = vadd.f32 %v369, %v439
          %v456 = vadd.f32 %v370, %v440
          %v457 = vadd.f32 %v371, %v441
          %v458 = vadd.f32 %v372, %v442
          %v459 = vadd.f32 %v373, %v443
          %v460 = vadd.f32 %v374, %v444
          %v461 = vadd.f32 %v375, %v445
          %v462 = vadd.f32 %v376, %v446
          %v463 = vadd.f32 %v377, %v447
          %v464 = vadd.f32 %v378, %v448
          %v465 = vadd.f32 %v379, %v449
          %v466 = vadd.f32 %v380, %v450
          %v467 = vadd.f32 %v381, %v451
          %v468 = vperm.slane %v319, 1
          %v469 = vperm.slane %v320, 1
          %v470 = vsel %vm418, %v468, 0.0
          %v471 = vsel %vm419, %v469, 0.0
          %v472 = vsel %vm420, %v468, 0.0
          %v473 = vsel %vm421, %v469, 0.0
          %v474 = vsel %vm422, %v468, 0.0
          %v475 = vsel %vm423, %v469, 0.0
          %v476 = vsel %vm424, %v468, 0.0
          %v477 = vsel %vm425, %v469, 0.0
          %v478 = vsel %vm426, %v468, 0.0
          %v479 = vsel %vm427, %v469, 0.0
          %v480 = vsel %vm428, %v468, 0.0
          %v481 = vsel %vm429, %v469, 0.0
          %v482 = vsel %vm430, %v468, 0.0
          %v483 = vsel %vm431, %v469, 0.0
          %v484 = vsel %vm432, %v468, 0.0
          %v485 = vsel %vm433, %v469, 0.0
          %v486 = vadd.f32 %v400, %v470
          %v487 = vadd.f32 %v401, %v471
          %v488 = vadd.f32 %v402, %v472
          %v489 = vadd.f32 %v403, %v473
          %v490 = vadd.f32 %v404, %v474
          %v491 = vadd.f32 %v405, %v475
          %v492 = vadd.f32 %v406, %v476
          %v493 = vadd.f32 %v407, %v477
          %v494 = vadd.f32 %v408, %v478
          %v495 = vadd.f32 %v409, %v479
          %v496 = vadd.f32 %v410, %v480
          %v497 = vadd.f32 %v411, %v481
          %v498 = vadd.f32 %v412, %v482
          %v499 = vadd.f32 %v413, %v483
          %v500 = vadd.f32 %v414, %v484
          %v501 = vadd.f32 %v415, %v485
          %v502 = vperm.slane %v313, 2
          %v503 = vperm.slane %v314, 2
          %vm504 = vcmp.eq.s32.totalorder %v502, %v322
          %vm505 = vcmp.eq.s32.totalorder %v503, %v322
          %vm506 = vcmp.eq.s32.totalorder %v502, %v323
          %vm507 = vcmp.eq.s32.totalorder %v503, %v323
          %vm508 = vcmp.eq.s32.totalorder %v502, %v324
          %vm509 = vcmp.eq.s32.totalorder %v503, %v324
          %vm510 = vcmp.eq.s32.totalorder %v502, %v325
          %vm511 = vcmp.eq.s32.totalorder %v503, %v325
          %vm512 = vcmp.eq.s32.totalorder %v502, %v326
          %vm513 = vcmp.eq.s32.totalorder %v503, %v326
          %vm514 = vcmp.eq.s32.totalorder %v502, %v327
          %vm515 = vcmp.eq.s32.totalorder %v503, %v327
          %vm516 = vcmp.eq.s32.totalorder %v502, %v328
          %vm517 = vcmp.eq.s32.totalorder %v503, %v328
          %vm518 = vcmp.eq.s32.totalorder %v502, %v329
          %vm519 = vcmp.eq.s32.totalorder %v503, %v329
          %v520 = vperm.slane %v317, 2
          %v521 = vperm.slane %v318, 2
          %v522 = vsel %vm504, %v520, 0.0
          %v523 = vsel %vm505, %v521, 0.0
          %v524 = vsel %vm506, %v520, 0.0
          %v525 = vsel %vm507, %v521, 0.0
          %v526 = vsel %vm508, %v520, 0.0
          %v527 = vsel %vm509, %v521, 0.0
          %v528 = vsel %vm510, %v520, 0.0
          %v529 = vsel %vm511, %v521, 0.0
          %v530 = vsel %vm512, %v520, 0.0
          %v531 = vsel %vm513, %v521, 0.0
          %v532 = vsel %vm514, %v520, 0.0
          %v533 = vsel %vm515, %v521, 0.0
          %v534 = vsel %vm516, %v520, 0.0
          %v535 = vsel %vm517, %v521, 0.0
          %v536 = vsel %vm518, %v520, 0.0
          %v537 = vsel %vm519, %v521, 0.0
          %v538 = vadd.f32 %v452, %v522
          %v539 = vadd.f32 %v453, %v523
          %v540 = vadd.f32 %v454, %v524
          %v541 = vadd.f32 %v455, %v525
          %v542 = vadd.f32 %v456, %v526
          %v543 = vadd.f32 %v457, %v527
          %v544 = vadd.f32 %v458, %v528
          %v545 = vadd.f32 %v459, %v529
          %v546 = vadd.f32 %v460, %v530
          %v547 = vadd.f32 %v461, %v531
          %v548 = vadd.f32 %v462, %v532
          %v549 = vadd.f32 %v463, %v533
          %v550 = vadd.f32 %v464, %v534
          %v551 = vadd.f32 %v465, %v535
          %v552 = vadd.f32 %v466, %v536
          %v553 = vadd.f32 %v467, %v537
          %v554 = vperm.slane %v319, 2
          %v555 = vperm.slane %v320, 2
          %v556 = vsel %vm504, %v554, 0.0
          %v557 = vsel %vm505, %v555, 0.0
          %v558 = vsel %vm506, %v554, 0.0
          %v559 = vsel %vm507, %v555, 0.0
          %v560 = vsel %vm508, %v554, 0.0
          %v561 = vsel %vm509, %v555, 0.0
          %v562 = vsel %vm510, %v554, 0.0
          %v563 = vsel %vm511, %v555, 0.0
          %v564 = vsel %vm512, %v554, 0.0
          %v565 = vsel %vm513, %v555, 0.0
          %v566 = vsel %vm514, %v554, 0.0
          %v567 = vsel %vm515, %v555, 0.0
          %v568 = vsel %vm516, %v554, 0.0
          %v569 = vsel %vm517, %v555, 0.0
          %v570 = vsel %vm518, %v554, 0.0
          %v571 = vsel %vm519, %v555, 0.0
          %v572 = vadd.f32 %v486, %v556
          %v573 = vadd.f32 %v487, %v557
          %v574 = vadd.f32 %v488, %v558
          %v575 = vadd.f32 %v489, %v559
          %v576 = vadd.f32 %v490, %v560
          %v577 = vadd.f32 %v491, %v561
          %v578 = vadd.f32 %v492, %v562
          %v579 = vadd.f32 %v493, %v563
          %v580 = vadd.f32 %v494, %v564
          %v581 = vadd.f32 %v495, %v565
          %v582 = vadd.f32 %v496, %v566
          %v583 = vadd.f32 %v497, %v567
          %v584 = vadd.f32 %v498, %v568
          %v585 = vadd.f32 %v499, %v569
          %v586 = vadd.f32 %v500, %v570
          %v587 = vadd.f32 %v501, %v571
          %v588 = vperm.slane %v313, 3
          %v589 = vperm.slane %v314, 3
          %vm590 = vcmp.eq.s32.totalorder %v588, %v322
          %vm591 = vcmp.eq.s32.totalorder %v589, %v322
          %vm592 = vcmp.eq.s32.totalorder %v588, %v323
          %vm593 = vcmp.eq.s32.totalorder %v589, %v323
          %vm594 = vcmp.eq.s32.totalorder %v588, %v324
          %vm595 = vcmp.eq.s32.totalorder %v589, %v324
          %vm596 = vcmp.eq.s32.totalorder %v588, %v325
          %vm597 = vcmp.eq.s32.totalorder %v589, %v325
          %vm598 = vcmp.eq.s32.totalorder %v588, %v326
          %vm599 = vcmp.eq.s32.totalorder %v589, %v326
          %vm600 = vcmp.eq.s32.totalorder %v588, %v327
          %vm601 = vcmp.eq.s32.totalorder %v589, %v327
          %vm602 = vcmp.eq.s32.totalorder %v588, %v328
          %vm603 = vcmp.eq.s32.totalorder %v589, %v328
          %vm604 = vcmp.eq.s32.totalorder %v588, %v329
          %vm605 = vcmp.eq.s32.totalorder %v589, %v329
          %v606 = vperm.slane %v317, 3
          %v607 = vperm.slane %v318, 3
          %v608 = vsel %vm590, %v606, 0.0
          %v609 = vsel %vm591, %v607, 0.0
          %v610 = vsel %vm592, %v606, 0.0
          %v611 = vsel %vm593, %v607, 0.0
          %v612 = vsel %vm594, %v606, 0.0
          %v613 = vsel %vm595, %v607, 0.0
          %v614 = vsel %vm596, %v606, 0.0
          %v615 = vsel %vm597, %v607, 0.0
          %v616 = vsel %vm598, %v606, 0.0
          %v617 = vsel %vm599, %v607, 0.0
          %v618 = vsel %vm600, %v606, 0.0
          %v619 = vsel %vm601, %v607, 0.0
          %v620 = vsel %vm602, %v606, 0.0
          %v621 = vsel %vm603, %v607, 0.0
          %v622 = vsel %vm604, %v606, 0.0
          %v623 = vsel %vm605, %v607, 0.0
          %v624 = vadd.f32 %v538, %v608
          %v625 = vadd.f32 %v539, %v609
          %v626 = vadd.f32 %v540, %v610
          %v627 = vadd.f32 %v541, %v611
          %v628 = vadd.f32 %v542, %v612
          %v629 = vadd.f32 %v543, %v613
          %v630 = vadd.f32 %v544, %v614
          %v631 = vadd.f32 %v545, %v615
          %v632 = vadd.f32 %v546, %v616
          %v633 = vadd.f32 %v547, %v617
          %v634 = vadd.f32 %v548, %v618
          %v635 = vadd.f32 %v549, %v619
          %v636 = vadd.f32 %v550, %v620
          %v637 = vadd.f32 %v551, %v621
          %v638 = vadd.f32 %v552, %v622
          %v639 = vadd.f32 %v553, %v623
          %v640 = vperm.slane %v319, 3
          %v641 = vperm.slane %v320, 3
          %v642 = vsel %vm590, %v640, 0.0
          %v643 = vsel %vm591, %v641, 0.0
          %v644 = vsel %vm592, %v640, 0.0
          %v645 = vsel %vm593, %v641, 0.0
          %v646 = vsel %vm594, %v640, 0.0
          %v647 = vsel %vm595, %v641, 0.0
          %v648 = vsel %vm596, %v640, 0.0
          %v649 = vsel %vm597, %v641, 0.0
          %v650 = vsel %vm598, %v640, 0.0
          %v651 = vsel %vm599, %v641, 0.0
          %v652 = vsel %vm600, %v640, 0.0
          %v653 = vsel %vm601, %v641, 0.0
          %v654 = vsel %vm602, %v640, 0.0
          %v655 = vsel %vm603, %v641, 0.0
          %v656 = vsel %vm604, %v640, 0.0
          %v657 = vsel %vm605, %v641, 0.0
          %v658 = vadd.f32 %v572, %v642
          %v659 = vadd.f32 %v573, %v643
          %v660 = vadd.f32 %v574, %v644
          %v661 = vadd.f32 %v575, %v645
          %v662 = vadd.f32 %v576, %v646
          %v663 = vadd.f32 %v577, %v647
          %v664 = vadd.f32 %v578, %v648
          %v665 = vadd.f32 %v579, %v649
          %v666 = vadd.f32 %v580, %v650
          %v667 = vadd.f32 %v581, %v651
          %v668 = vadd.f32 %v582, %v652
          %v669 = vadd.f32 %v583, %v653
          %v670 = vadd.f32 %v584, %v654
          %v671 = vadd.f32 %v585, %v655
          %v672 = vadd.f32 %v586, %v656
          %v673 = vadd.f32 %v587, %v657
          %v674 = vperm.slane %v313, 4
          %v675 = vperm.slane %v314, 4
          %vm676 = vcmp.eq.s32.totalorder %v674, %v322
          %vm677 = vcmp.eq.s32.totalorder %v675, %v322
          %vm678 = vcmp.eq.s32.totalorder %v674, %v323
          %vm679 = vcmp.eq.s32.totalorder %v675, %v323
          %vm680 = vcmp.eq.s32.totalorder %v674, %v324
          %vm681 = vcmp.eq.s32.totalorder %v675, %v324
          %vm682 = vcmp.eq.s32.totalorder %v674, %v325
          %vm683 = vcmp.eq.s32.totalorder %v675, %v325
          %vm684 = vcmp.eq.s32.totalorder %v674, %v326
          %vm685 = vcmp.eq.s32.totalorder %v675, %v326
          %vm686 = vcmp.eq.s32.totalorder %v674, %v327
          %vm687 = vcmp.eq.s32.totalorder %v675, %v327
          %vm688 = vcmp.eq.s32.totalorder %v674, %v328
          %vm689 = vcmp.eq.s32.totalorder %v675, %v328
          %vm690 = vcmp.eq.s32.totalorder %v674, %v329
          %vm691 = vcmp.eq.s32.totalorder %v675, %v329
          %v692 = vperm.slane %v317, 4
          %v693 = vperm.slane %v318, 4
          %v694 = vsel %vm676, %v692, 0.0
          %v695 = vsel %vm677, %v693, 0.0
          %v696 = vsel %vm678, %v692, 0.0
          %v697 = vsel %vm679, %v693, 0.0
          %v698 = vsel %vm680, %v692, 0.0
          %v699 = vsel %vm681, %v693, 0.0
          %v700 = vsel %vm682, %v692, 0.0
          %v701 = vsel %vm683, %v693, 0.0
          %v702 = vsel %vm684, %v692, 0.0
          %v703 = vsel %vm685, %v693, 0.0
          %v704 = vsel %vm686, %v692, 0.0
          %v705 = vsel %vm687, %v693, 0.0
          %v706 = vsel %vm688, %v692, 0.0
          %v707 = vsel %vm689, %v693, 0.0
          %v708 = vsel %vm690, %v692, 0.0
          %v709 = vsel %vm691, %v693, 0.0
          %v710 = vadd.f32 %v624, %v694
          %v711 = vadd.f32 %v625, %v695
          %v712 = vadd.f32 %v626, %v696
          %v713 = vadd.f32 %v627, %v697
          %v714 = vadd.f32 %v628, %v698
          %v715 = vadd.f32 %v629, %v699
          %v716 = vadd.f32 %v630, %v700
          %v717 = vadd.f32 %v631, %v701
          %v718 = vadd.f32 %v632, %v702
          %v719 = vadd.f32 %v633, %v703
          %v720 = vadd.f32 %v634, %v704
          %v721 = vadd.f32 %v635, %v705
          %v722 = vadd.f32 %v636, %v706
          %v723 = vadd.f32 %v637, %v707
          %v724 = vadd.f32 %v638, %v708
          %v725 = vadd.f32 %v639, %v709
          %v726 = vperm.slane %v319, 4
          %v727 = vperm.slane %v320, 4
          %v728 = vsel %vm676, %v726, 0.0
          %v729 = vsel %vm677, %v727, 0.0
          %v730 = vsel %vm678, %v726, 0.0
          %v731 = vsel %vm679, %v727, 0.0
          %v732 = vsel %vm680, %v726, 0.0
          %v733 = vsel %vm681, %v727, 0.0
          %v734 = vsel %vm682, %v726, 0.0
          %v735 = vsel %vm683, %v727, 0.0
          %v736 = vsel %vm684, %v726, 0.0
          %v737 = vsel %vm685, %v727, 0.0
          %v738 = vsel %vm686, %v726, 0.0
          %v739 = vsel %vm687, %v727, 0.0
          %v740 = vsel %vm688, %v726, 0.0
          %v741 = vsel %vm689, %v727, 0.0
          %v742 = vsel %vm690, %v726, 0.0
          %v743 = vsel %vm691, %v727, 0.0
          %v744 = vadd.f32 %v658, %v728
          %v745 = vadd.f32 %v659, %v729
          %v746 = vadd.f32 %v660, %v730
          %v747 = vadd.f32 %v661, %v731
          %v748 = vadd.f32 %v662, %v732
          %v749 = vadd.f32 %v663, %v733
          %v750 = vadd.f32 %v664, %v734
          %v751 = vadd.f32 %v665, %v735
          %v752 = vadd.f32 %v666, %v736
          %v753 = vadd.f32 %v667, %v737
          %v754 = vadd.f32 %v668, %v738
          %v755 = vadd.f32 %v669, %v739
          %v756 = vadd.f32 %v670, %v740
          %v757 = vadd.f32 %v671, %v741
          %v758 = vadd.f32 %v672, %v742
          %v759 = vadd.f32 %v673, %v743
          %v760 = vperm.slane %v313, 5
          %v761 = vperm.slane %v314, 5
          %vm762 = vcmp.eq.s32.totalorder %v760, %v322
          %vm763 = vcmp.eq.s32.totalorder %v761, %v322
          %vm764 = vcmp.eq.s32.totalorder %v760, %v323
          %vm765 = vcmp.eq.s32.totalorder %v761, %v323
          %vm766 = vcmp.eq.s32.totalorder %v760, %v324
          %vm767 = vcmp.eq.s32.totalorder %v761, %v324
          %vm768 = vcmp.eq.s32.totalorder %v760, %v325
          %vm769 = vcmp.eq.s32.totalorder %v761, %v325
          %vm770 = vcmp.eq.s32.totalorder %v760, %v326
          %vm771 = vcmp.eq.s32.totalorder %v761, %v326
          %vm772 = vcmp.eq.s32.totalorder %v760, %v327
          %vm773 = vcmp.eq.s32.totalorder %v761, %v327
          %vm774 = vcmp.eq.s32.totalorder %v760, %v328
          %vm775 = vcmp.eq.s32.totalorder %v761, %v328
          %vm776 = vcmp.eq.s32.totalorder %v760, %v329
          %vm777 = vcmp.eq.s32.totalorder %v761, %v329
          %v778 = vperm.slane %v317, 5
          %v779 = vperm.slane %v318, 5
          %v780 = vsel %vm762, %v778, 0.0
          %v781 = vsel %vm763, %v779, 0.0
          %v782 = vsel %vm764, %v778, 0.0
          %v783 = vsel %vm765, %v779, 0.0
          %v784 = vsel %vm766, %v778, 0.0
          %v785 = vsel %vm767, %v779, 0.0
          %v786 = vsel %vm768, %v778, 0.0
          %v787 = vsel %vm769, %v779, 0.0
          %v788 = vsel %vm770, %v778, 0.0
          %v789 = vsel %vm771, %v779, 0.0
          %v790 = vsel %vm772, %v778, 0.0
          %v791 = vsel %vm773, %v779, 0.0
          %v792 = vsel %vm774, %v778, 0.0
          %v793 = vsel %vm775, %v779, 0.0
          %v794 = vsel %vm776, %v778, 0.0
          %v795 = vsel %vm777, %v779, 0.0
          %v796 = vadd.f32 %v710, %v780
          %v797 = vadd.f32 %v711, %v781
          %v798 = vadd.f32 %v712, %v782
          %v799 = vadd.f32 %v713, %v783
          %v800 = vadd.f32 %v714, %v784
          %v801 = vadd.f32 %v715, %v785
          %v802 = vadd.f32 %v716, %v786
          %v803 = vadd.f32 %v717, %v787
          %v804 = vadd.f32 %v718, %v788
          %v805 = vadd.f32 %v719, %v789
          %v806 = vadd.f32 %v720, %v790
          %v807 = vadd.f32 %v721, %v791
          %v808 = vadd.f32 %v722, %v792
          %v809 = vadd.f32 %v723, %v793
          %v810 = vadd.f32 %v724, %v794
          %v811 = vadd.f32 %v725, %v795
          %v812 = vperm.slane %v319, 5
          %v813 = vperm.slane %v320, 5
          %v814 = vsel %vm762, %v812, 0.0
          %v815 = vsel %vm763, %v813, 0.0
          %v816 = vsel %vm764, %v812, 0.0
          %v817 = vsel %vm765, %v813, 0.0
          %v818 = vsel %vm766, %v812, 0.0
          %v819 = vsel %vm767, %v813, 0.0
          %v820 = vsel %vm768, %v812, 0.0
          %v821 = vsel %vm769, %v813, 0.0
          %v822 = vsel %vm770, %v812, 0.0
          %v823 = vsel %vm771, %v813, 0.0
          %v824 = vsel %vm772, %v812, 0.0
          %v825 = vsel %vm773, %v813, 0.0
          %v826 = vsel %vm774, %v812, 0.0
          %v827 = vsel %vm775, %v813, 0.0
          %v828 = vsel %vm776, %v812, 0.0
          %v829 = vsel %vm777, %v813, 0.0
          %v830 = vadd.f32 %v744, %v814
          %v831 = vadd.f32 %v745, %v815
          %v832 = vadd.f32 %v746, %v816
          %v833 = vadd.f32 %v747, %v817
          %v834 = vadd.f32 %v748, %v818
          %v835 = vadd.f32 %v749, %v819
          %v836 = vadd.f32 %v750, %v820
          %v837 = vadd.f32 %v751, %v821
          %v838 = vadd.f32 %v752, %v822
          %v839 = vadd.f32 %v753, %v823
          %v840 = vadd.f32 %v754, %v824
          %v841 = vadd.f32 %v755, %v825
          %v842 = vadd.f32 %v756, %v826
          %v843 = vadd.f32 %v757, %v827
          %v844 = vadd.f32 %v758, %v828
          %v845 = vadd.f32 %v759, %v829
          %v846 = vperm.slane %v313, 6
          %v847 = vperm.slane %v314, 6
          %vm848 = vcmp.eq.s32.totalorder %v846, %v322
          %vm849 = vcmp.eq.s32.totalorder %v847, %v322
          %vm850 = vcmp.eq.s32.totalorder %v846, %v323
          %vm851 = vcmp.eq.s32.totalorder %v847, %v323
          %vm852 = vcmp.eq.s32.totalorder %v846, %v324
          %vm853 = vcmp.eq.s32.totalorder %v847, %v324
          %vm854 = vcmp.eq.s32.totalorder %v846, %v325
          %vm855 = vcmp.eq.s32.totalorder %v847, %v325
          %vm856 = vcmp.eq.s32.totalorder %v846, %v326
          %vm857 = vcmp.eq.s32.totalorder %v847, %v326
          %vm858 = vcmp.eq.s32.totalorder %v846, %v327
          %vm859 = vcmp.eq.s32.totalorder %v847, %v327
          %vm860 = vcmp.eq.s32.totalorder %v846, %v328
          %vm861 = vcmp.eq.s32.totalorder %v847, %v328
          %vm862 = vcmp.eq.s32.totalorder %v846, %v329
          %vm863 = vcmp.eq.s32.totalorder %v847, %v329
          %v864 = vperm.slane %v317, 6
          %v865 = vperm.slane %v318, 6
          %v866 = vsel %vm848, %v864, 0.0
          %v867 = vsel %vm849, %v865, 0.0
          %v868 = vsel %vm850, %v864, 0.0
          %v869 = vsel %vm851, %v865, 0.0
          %v870 = vsel %vm852, %v864, 0.0
          %v871 = vsel %vm853, %v865, 0.0
          %v872 = vsel %vm854, %v864, 0.0
          %v873 = vsel %vm855, %v865, 0.0
          %v874 = vsel %vm856, %v864, 0.0
          %v875 = vsel %vm857, %v865, 0.0
          %v876 = vsel %vm858, %v864, 0.0
          %v877 = vsel %vm859, %v865, 0.0
          %v878 = vsel %vm860, %v864, 0.0
          %v879 = vsel %vm861, %v865, 0.0
          %v880 = vsel %vm862, %v864, 0.0
          %v881 = vsel %vm863, %v865, 0.0
          %v882 = vadd.f32 %v796, %v866
          %v883 = vadd.f32 %v797, %v867
          %v884 = vadd.f32 %v798, %v868
          %v885 = vadd.f32 %v799, %v869
          %v886 = vadd.f32 %v800, %v870
          %v887 = vadd.f32 %v801, %v871
          %v888 = vadd.f32 %v802, %v872
          %v889 = vadd.f32 %v803, %v873
          %v890 = vadd.f32 %v804, %v874
          %v891 = vadd.f32 %v805, %v875
          %v892 = vadd.f32 %v806, %v876
          %v893 = vadd.f32 %v807, %v877
          %v894 = vadd.f32 %v808, %v878
          %v895 = vadd.f32 %v809, %v879
          %v896 = vadd.f32 %v810, %v880
          %v897 = vadd.f32 %v811, %v881
          %v898 = vperm.slane %v319, 6
          %v899 = vperm.slane %v320, 6
          %v900 = vsel %vm848, %v898, 0.0
          %v901 = vsel %vm849, %v899, 0.0
          %v902 = vsel %vm850, %v898, 0.0
          %v903 = vsel %vm851, %v899, 0.0
          %v904 = vsel %vm852, %v898, 0.0
          %v905 = vsel %vm853, %v899, 0.0
          %v906 = vsel %vm854, %v898, 0.0
          %v907 = vsel %vm855, %v899, 0.0
          %v908 = vsel %vm856, %v898, 0.0
          %v909 = vsel %vm857, %v899, 0.0
          %v910 = vsel %vm858, %v898, 0.0
          %v911 = vsel %vm859, %v899, 0.0
          %v912 = vsel %vm860, %v898, 0.0
          %v913 = vsel %vm861, %v899, 0.0
          %v914 = vsel %vm862, %v898, 0.0
          %v915 = vsel %vm863, %v899, 0.0
          %v916 = vadd.f32 %v830, %v900
          %v917 = vadd.f32 %v831, %v901
          %v918 = vadd.f32 %v832, %v902
          %v919 = vadd.f32 %v833, %v903
          %v920 = vadd.f32 %v834, %v904
          %v921 = vadd.f32 %v835, %v905
          %v922 = vadd.f32 %v836, %v906
          %v923 = vadd.f32 %v837, %v907
          %v924 = vadd.f32 %v838, %v908
          %v925 = vadd.f32 %v839, %v909
          %v926 = vadd.f32 %v840, %v910
          %v927 = vadd.f32 %v841, %v911
          %v928 = vadd.f32 %v842, %v912
          %v929 = vadd.f32 %v843, %v913
          %v930 = vadd.f32 %v844, %v914
          %v931 = vadd.f32 %v845, %v915
          %v932 = vperm.slane %v313, 7
          %v933 = vperm.slane %v314, 7
          %vm934 = vcmp.eq.s32.totalorder %v932, %v322
          %vm935 = vcmp.eq.s32.totalorder %v933, %v322
          %vm936 = vcmp.eq.s32.totalorder %v932, %v323
          %vm937 = vcmp.eq.s32.totalorder %v933, %v323
          %vm938 = vcmp.eq.s32.totalorder %v932, %v324
          %vm939 = vcmp.eq.s32.totalorder %v933, %v324
          %vm940 = vcmp.eq.s32.totalorder %v932, %v325
          %vm941 = vcmp.eq.s32.totalorder %v933, %v325
          %vm942 = vcmp.eq.s32.totalorder %v932, %v326
          %vm943 = vcmp.eq.s32.totalorder %v933, %v326
          %vm944 = vcmp.eq.s32.totalorder %v932, %v327
          %vm945 = vcmp.eq.s32.totalorder %v933, %v327
          %vm946 = vcmp.eq.s32.totalorder %v932, %v328
          %vm947 = vcmp.eq.s32.totalorder %v933, %v328
          %vm948 = vcmp.eq.s32.totalorder %v932, %v329
          %vm949 = vcmp.eq.s32.totalorder %v933, %v329
          %v950 = vperm.slane %v317, 7
          %v951 = vperm.slane %v318, 7
          %v952 = vsel %vm934, %v950, 0.0
          %v953 = vsel %vm935, %v951, 0.0
          %v954 = vsel %vm936, %v950, 0.0
          %v955 = vsel %vm937, %v951, 0.0
          %v956 = vsel %vm938, %v950, 0.0
          %v957 = vsel %vm939, %v951, 0.0
          %v958 = vsel %vm940, %v950, 0.0
          %v959 = vsel %vm941, %v951, 0.0
          %v960 = vsel %vm942, %v950, 0.0
          %v961 = vsel %vm943, %v951, 0.0
          %v962 = vsel %vm944, %v950, 0.0
          %v963 = vsel %vm945, %v951, 0.0
          %v964 = vsel %vm946, %v950, 0.0
          %v965 = vsel %vm947, %v951, 0.0
          %v966 = vsel %vm948, %v950, 0.0
          %v967 = vsel %vm949, %v951, 0.0
          %v968 = vadd.f32 %v882, %v952
          %v969 = vadd.f32 %v883, %v953
          %v970 = vadd.f32 %v884, %v954
          %v971 = vadd.f32 %v885, %v955
          %v972 = vadd.f32 %v886, %v956
          %v973 = vadd.f32 %v887, %v957
          %v974 = vadd.f32 %v888, %v958
          %v975 = vadd.f32 %v889, %v959
          %v976 = vadd.f32 %v890, %v960
          %v977 = vadd.f32 %v891, %v961
          %v978 = vadd.f32 %v892, %v962
          %v979 = vadd.f32 %v893, %v963
          %v980 = vadd.f32 %v894, %v964
          %v981 = vadd.f32 %v895, %v965
          %v982 = vadd.f32 %v896, %v966
          %v983 = vadd.f32 %v897, %v967
          %v984 = vperm.slane %v319, 7
          %v985 = vperm.slane %v320, 7
          %v986 = vsel %vm934, %v984, 0.0
          %v987 = vsel %vm935, %v985, 0.0
          %v988 = vsel %vm936, %v984, 0.0
          %v989 = vsel %vm937, %v985, 0.0
          %v990 = vsel %vm938, %v984, 0.0
          %v991 = vsel %vm939, %v985, 0.0
          %v992 = vsel %vm940, %v984, 0.0
          %v993 = vsel %vm941, %v985, 0.0
          %v994 = vsel %vm942, %v984, 0.0
          %v995 = vsel %vm943, %v985, 0.0
          %v996 = vsel %vm944, %v984, 0.0
          %v997 = vsel %vm945, %v985, 0.0
          %v998 = vsel %vm946, %v984, 0.0
          %v999 = vsel %vm947, %v985, 0.0
          %v1000 = vsel %vm948, %v984, 0.0
          %v1001 = vsel %vm949, %v985, 0.0
          %v1002 = vadd.f32 %v916, %v986
          %v1003 = vadd.f32 %v917, %v987
          %v1004 = vadd.f32 %v918, %v988
          %v1005 = vadd.f32 %v919, %v989
          %v1006 = vadd.f32 %v920, %v990
          %v1007 = vadd.f32 %v921, %v991
          %v1008 = vadd.f32 %v922, %v992
          %v1009 = vadd.f32 %v923, %v993
          %v1010 = vadd.f32 %v924, %v994
          %v1011 = vadd.f32 %v925, %v995
          %v1012 = vadd.f32 %v926, %v996
          %v1013 = vadd.f32 %v927, %v997
          %v1014 = vadd.f32 %v928, %v998
          %v1015 = vadd.f32 %v929, %v999
          %v1016 = vadd.f32 %v930, %v1000
          %v1017 = vadd.f32 %v931, %v1001
          %v1018 = vld [vmem:[#allocation3] sm:$0xff]
          %v1019 = vld [vmem:[#allocation3 + $0x8] sm:$0xff]
          %v1020 = vld [vmem:[#allocation3 + $0x10] sm:$0xff]
          %v1021 = vld [vmem:[#allocation3 + $0x18] sm:$0xff]
          %v1022 = vld [vmem:[#allocation3 + $0x20] sm:$0x1]
          %vm1023 = vcmask 523264
          %v1025 = vsel %vm1023, %v1018, 0
          %v1028 = vsel %vm1023, %v1019, 0
          %v1031 = vsel %vm1023, %v1020, 0
          %v1034 = vsel %vm1023, %v1021, 0
          %v1037 = vsel %vm1023, %v1022, 0
          %1039 = vmatpush.msra.mxu0 0.0
          %1040 = vmatpush.msra.mxu0 0.0
          %1041 = vmatpush.msra.mxu0 0.0
          %1042 = vmatpush.msra.mxu0 0.0
          %1043 = vmatpush.msra.mxu0 0.0
          %1044 = vmatpush.msra.mxu0 0.0
          %1045 = vmatpush.msra.mxu0 0.0
          %1046 = vmatpush.msra.mxu0 0.0
          %1047 = vmatpush.msra.mxu0 %v982
          %1048 = vmatpush.msra.mxu0 %v980
          %1049 = vmatpush.msra.mxu0 %v978
          %1050 = vmatpush.msra.mxu0 %v976
          %1051 = vmatpush.msra.mxu0 %v974
          %1052 = vmatpush.msra.mxu0 %v972
          %1053 = vmatpush.msra.mxu0 %v970
          %1054 = vmatpush.msra.mxu0 %v968
          %1055 = vmatmul.f32.gmra.mxu0 %v1025
          %v1056 = vpop.f32.mrf.mxu0
          %v1057 = vadd.f32 0.0, %v1056
          %1058 = vmatmul.f32.gmra.mxu0 %v1028
          %v1059 = vpop.f32.mrf.mxu0
          %v1060 = vadd.f32 0.0, %v1059
          %1061 = vmatmul.f32.gmra.mxu0 %v1031
          %v1062 = vpop.f32.mrf.mxu0
          %v1063 = vadd.f32 0.0, %v1062
          %1064 = vmatmul.f32.gmra.mxu0 %v1034
          %v1065 = vpop.f32.mrf.mxu0
          %v1066 = vadd.f32 0.0, %v1065
          %1067 = vmatmul.f32.gmra.mxu0 %v1037
          %v1068 = vpop.f32.mrf.mxu0
          %v1069 = vadd.f32 0.0, %v1068
          %1070 = vdwg.mxu0
          %1071 = vmatpush.msra.mxu0 0.0
          %1072 = vmatpush.msra.mxu0 0.0
          %1073 = vmatpush.msra.mxu0 0.0
          %1074 = vmatpush.msra.mxu0 0.0
          %1075 = vmatpush.msra.mxu0 0.0
          %1076 = vmatpush.msra.mxu0 0.0
          %1077 = vmatpush.msra.mxu0 0.0
          %1078 = vmatpush.msra.mxu0 0.0
          %1079 = vmatpush.msra.mxu0 %v983
          %1080 = vmatpush.msra.mxu0 %v981
          %1081 = vmatpush.msra.mxu0 %v979
          %1082 = vmatpush.msra.mxu0 %v977
          %1083 = vmatpush.msra.mxu0 %v975
          %1084 = vmatpush.msra.mxu0 %v973
          %1085 = vmatpush.msra.mxu0 %v971
          %1086 = vmatpush.msra.mxu0 %v969
          %1087 = vmatmul.f32.gmra.mxu0 %v1025
          %v1088 = vpop.f32.mrf.mxu0
          %v1089 = vadd.f32 0.0, %v1088
          %1090 = vmatmul.f32.gmra.mxu0 %v1028
          %v1091 = vpop.f32.mrf.mxu0
          %v1092 = vadd.f32 0.0, %v1091
          %1093 = vmatmul.f32.gmra.mxu0 %v1031
          %v1094 = vpop.f32.mrf.mxu0
          %v1095 = vadd.f32 0.0, %v1094
          %1096 = vmatmul.f32.gmra.mxu0 %v1034
          %v1097 = vpop.f32.mrf.mxu0
          %v1098 = vadd.f32 0.0, %v1097
          %1099 = vmatmul.f32.gmra.mxu0 %v1037
          %v1100 = vpop.f32.mrf.mxu0
          %v1101 = vadd.f32 0.0, %v1100
          %1102 = vdwg.mxu0
          %v1103 = vld [vmem:[%s1] sm:$0x1]
          %v1105 = vsel %vm1023, %v1103, 0
          %1107 = vmatpush.msra.mxu0 0.0
          %1108 = vmatpush.msra.mxu0 0.0
          %1109 = vmatpush.msra.mxu0 0.0
          %1110 = vmatpush.msra.mxu0 0.0
          %1111 = vmatpush.msra.mxu0 0.0
          %1112 = vmatpush.msra.mxu0 0.0
          %1113 = vmatpush.msra.mxu0 0.0
          %1114 = vmatpush.msra.mxu0 0.0
          %1115 = vmatpush.msra.mxu0 %v1016
          %1116 = vmatpush.msra.mxu0 %v1014
          %1117 = vmatpush.msra.mxu0 %v1012
          %1118 = vmatpush.msra.mxu0 %v1010
          %1119 = vmatpush.msra.mxu0 %v1008
          %1120 = vmatpush.msra.mxu0 %v1006
          %1121 = vmatpush.msra.mxu0 %v1004
          %1122 = vmatpush.msra.mxu0 %v1002
          %1123 = vmatmul.f32.gmra.mxu0 %v1105
          %v1124 = vpop.f32.mrf.mxu0
          %v1125 = vadd.f32 0.0, %v1124
          %1126 = vdwg.mxu0
          %1127 = vmatpush.msra.mxu0 0.0
          %1128 = vmatpush.msra.mxu0 0.0
          %1129 = vmatpush.msra.mxu0 0.0
          %1130 = vmatpush.msra.mxu0 0.0
          %1131 = vmatpush.msra.mxu0 0.0
          %1132 = vmatpush.msra.mxu0 0.0
          %1133 = vmatpush.msra.mxu0 0.0
          %1134 = vmatpush.msra.mxu0 0.0
          %1135 = vmatpush.msra.mxu0 %v1017
          %1136 = vmatpush.msra.mxu0 %v1015
          %1137 = vmatpush.msra.mxu0 %v1013
          %1138 = vmatpush.msra.mxu0 %v1011
          %1139 = vmatpush.msra.mxu0 %v1009
          %1140 = vmatpush.msra.mxu0 %v1007
          %1141 = vmatpush.msra.mxu0 %v1005
          %1142 = vmatpush.msra.mxu0 %v1003
          %1143 = vmatmul.f32.gmra.mxu0 %v1105
          %v1144 = vpop.f32.mrf.mxu0
          %v1145 = vadd.f32 0.0, %v1144
          %1146 = vdwg.mxu0
          %v1147 = vmul.f32 %v1057, %v1057
          %v1148 = vmul.f32 %v1089, %v1089
          %v1149 = vmul.f32 %v1060, %v1060
          %v1150 = vmul.f32 %v1092, %v1092
          %v1151 = vmul.f32 %v1063, %v1063
          %v1152 = vmul.f32 %v1095, %v1095
          %v1153 = vmul.f32 %v1066, %v1066
          %v1154 = vmul.f32 %v1098, %v1098
          %v1155 = vadd.f32 %v1147, %v1149
          %v1156 = vadd.f32 %v1155, %v1151
          %v1157 = vadd.f32 %v1156, %v1153
          %v1158 = vrot.slane %v1157, 4
          %v1159 = vadd.f32 %v1157, %v1158
          %v1160 = vrot.slane %v1159, 2
          %v1161 = vadd.f32 %v1159, %v1160
          %v1162 = vrot.slane %v1161, 1
          %v1163 = vadd.f32 %v1161, %v1162
          %v1164 = vadd.f32 %v1148, %v1150
          %v1165 = vadd.f32 %v1164, %v1152
          %v1166 = vadd.f32 %v1165, %v1154
          %v1167 = vrot.slane %v1166, 4
          %v1168 = vadd.f32 %v1166, %v1167
          %v1169 = vrot.slane %v1168, 2
          %v1170 = vadd.f32 %v1168, %v1169
          %v1171 = vrot.slane %v1170, 1
          %v1172 = vadd.f32 %v1170, %v1171
          %v1173 = vsub.f32 %v1163, %v1125
          %v1174 = vsub.f32 %v1172, %v1145
          %v1175 = vmul.f32 %v1173, 0.5
          %v1176 = vmul.f32 %v1174, 0.5
          %v1177 = vadd.f32 %v1175, %v1069
          %v1178 = vadd.f32 %v1176, %v1101
          %v1179 = vstv %s301
          %v1180 = vadd.f32 %v1177, %v1179
          %v1181 = vadd.f32 %v1178, %v1179
          %v1184 = vrot.slane %v1181, 7
          %vm1185 = vcmask 1040384
          %v1186 = vsel %vm1185, %v1180, %v1184
          %s1188 = scalar_lea.vmem %s297, %s309 [#allocation9]
          %v1189 = vlaneseq
          %vm1190 = vcmp.ge.s32.totalorder %v1189, 0
          %vm1191 = vcmp.lt.s32.totalorder %v1189, 256
          %vm1192 = vmand %vm1190, %vm1191
          %1193 = vst.msk [vmem:[%s1188] sm:$0x3] %vm1192, %v1186
        $region57: #{tpu_custom_call.1} parent=39 // loop_footer
          %s307 = sadd.s32 1, %s303
        $region58: #{tpu_custom_call.1} parent=39 // loop_footer_branch
          %302 = sbr.rel target = $region54
        $region59: #{tpu_custom_call.1} parent=39 // loop_exit
          _
        %s1194 = sand.u32 %s147, 1
        %s1195 = scalar_lea.sflag [#allocation5], %s1194
        %s1196 = sand.u32 %s147, 1
        %s1197 = smul.addr %s1196, 4
        %s1198 = scalar_lea.vmem [#allocation9], %s1197
        // Predicated region
        $region60: #{tpu_custom_call.1} parent=39 // pred_check
          %p1199 = pneg %p157
        $region61: #{tpu_custom_call.1} parent=39 // pred_check_branch
          %1201 = sbr.rel (%p1199) target = $region63
        $region62: #{tpu_custom_call.1} parent=39 // pred_region
          %s1202 = smul.u32 4, %s24
          %1204 = vsyncadd %s1195, 0
          %s1205 = scalar_lea.hbm %s5, %s1202
          %s1207 = sshll.u32 %s1198, 4
          %s1208 = int_to_ptr.vmem [resolvable:$true] %s1207
          %s1209 = sshll.u32 %s1205, 4
          %s1210 = int_to_ptr.hbm [resolvable:$true] %s1209
          %1212 = dma.vmem_to_hbm [thread:$0]  %s1208, 64, %s1210, %s1195
        $region63: #{tpu_custom_call.1} parent=39 // pred_fallthru
          _
      $region40: #{tpu_custom_call.1} parent=5 // pred_fallthru
        _
      %p1213 = scmp.le.s32.totalorder 2, %s19
      // Predicated region
      $region64: #{tpu_custom_call.1} parent=5 // pred_check
        %p1214 = pneg %p1213
      $region65: #{tpu_custom_call.1} parent=5 // pred_check_branch
        %1216 = sbr.rel (%p1214) target = $region67
      $region66: #{tpu_custom_call.1} parent=5 // pred_region
        %s1217 = ssub.s32 %s19, 2
        // Predicated region
        $region68: #{tpu_custom_call.1} parent=66 // pred_check
          %p1218 = pneg %p163
        $region69: #{tpu_custom_call.1} parent=66 // pred_check_branch
          %1220 = sbr.rel (%p1218) target = $region71
        $region70: #{tpu_custom_call.1} parent=66 // pred_region
          %s1221 = sand.u32 %s148, 1
          %s1222 = scalar_lea.sflag [#allocation5], %s1221
          %s1223 = sand.u32 %s148, 1
          %s1224 = smul.addr %s1223, 4
          %s1225 = scalar_lea.vmem [#allocation9], %s1224
          %1227 = dma.done %s1222, 64
        $region71: #{tpu_custom_call.1} parent=66 // pred_fallthru
          _
      $region67: #{tpu_custom_call.1} parent=5 // pred_fallthru
        _
    $region6: #{tpu_custom_call.1} parent=1 // loop_footer
      %s23 = sadd.s32 1, %s19
    $region7: #{tpu_custom_call.1} parent=1 // loop_footer_branch
      %18 = sbr.rel target = $region3
    $region8: #{tpu_custom_call.1} parent=1 // loop_exit
      _
    %1228 = vsyncpa [#allocation4], 1
    %s1229 = scalar_lea.sflag [#allocation4], 1
    %1230 = vsyncpa %s1229, 1
    %1231 = vsyncpa [#allocation7], 1
    %s1232 = scalar_lea.sflag [#allocation7], 1
    %1233 = vsyncpa %s1232, 1
    %1234 = vsyncpa [#allocation5], 1
    %s1235 = scalar_lea.sflag [#allocation5], 1
    %1236 = vsyncpa %s1235, 1

</llo_original>
